<compile_context>
chip_gen: v7x
topology: tpu7x:2x2x1
jax: 0.10.0
libtpu: 0.0.40
codegen_flags: <defaults>
</compile_context>

<pallas_src>
import numpy as np
import jax
import jax.numpy as jnp
from jax import lax
from jax.experimental import pallas as pl
from jax.experimental.pallas import tpu as pltpu

# ----------------------------------------------------------------------------
# Small, module-consistent hyper-parameters
# ----------------------------------------------------------------------------
BATCH = 4
NUM_INPUTS = 32             # L (divisible by 4; original default 200)
NUM_HIDDEN = 32             # original default 128
NUM_OUTPUTS = 1
NUM_STEPS = 3
BETA = 0.9
THRESHOLD = 1.0             # snn.Leaky default threshold
C1_OUT = 16
C2_OUT = 32
KSIZE = 5
PAD = KSIZE // 2
K_PAD = 8                   # conv1 contraction padded 5 -> 8 (zero cols/rows)

L1 = NUM_INPUTS             # conv1 output length ('same', stride 1)
L2 = NUM_INPUTS // 2        # after pool1
L4 = NUM_INPUTS // 4        # after pool2
FC1_IN = C2_OUT * L4        # 256

R2 = BATCH * L2             # 64 rows at conv2 resolution
R4 = BATCH * L4             # 32 rows after pool2

# bf16 weight-slab layout (32 lanes wide)
W1_OFF = 0
W2_OFF = K_PAD                         # 8
FC1_OFF = W2_OFF + KSIZE * C1_OUT      # 88
WSLAB_ROWS = FC1_OFF + FC1_IN          # 344

# f32 bias/fc2 slab: row0=b1, row1=b2, row2=bfc1, row3=wfc2, row4[0]=bfc2
BIAS_ROWS = 8
BIAS_LANES = 32


# ----------------------------------------------------------------------------
# Pallas kernel: full SNN forward (all time steps), whole batch in one call
# ----------------------------------------------------------------------------
def snn_kernel(x1pool_ref,            # (2, R2, K_PAD) bf16  im2col'd input, pool phases
               wslab_ref,             # (WSLAB_ROWS, 32) bf16 packed weights
               bias_ref,              # (BIAS_ROWS, 32) f32 packed biases + fc2 row
               out_ref,               # (BATCH, NUM_OUTPUTS) f32
               c2_scr,                # (R2, C2) f32 scratch (pool2 source)
               s2_scr):               # (R4, C2) f32 scratch (fc1 gather source)
    f32, bf16 = jnp.float32, jnp.bfloat16

    # --- hoisted weight/bias reads (tiny at these sizes, reused every step) --
    w1    = wslab_ref[W1_OFF:W1_OFF + K_PAD, 0:C1_OUT]            # (8, 16)
    w2f   = wslab_ref[W2_OFF:W2_OFF + KSIZE * C1_OUT, :]          # (80, 32)
    wfc1f = wslab_ref[FC1_OFF:FC1_OFF + FC1_IN, :]                # (256, 32)
    b1      = bias_ref[0:1, 0:C1_OUT]                             # (1, 16)
    b2      = bias_ref[1:2, 0:C2_OUT]                             # (1, 32)
    bfc1    = bias_ref[2:3, 0:NUM_HIDDEN]                         # (1, 32)
    wfc2row = bias_ref[3:4, 0:NUM_HIDDEN]                         # (1, 32)
    bfc2    = bias_ref[4:5, 0:1]                                  # (1, 1)

    # --- conv1 + bias + pool1: state independent -> computed once ------------
    # Pooling is done "by construction": the host provides the im2col at the
    # two pool phases, so pool1 is just an elementwise max of two matmuls
    # (no scratch store, no strided read).
    cur1_a = jnp.dot(x1pool_ref[0], w1, preferred_element_type=f32)
    cur1_b = jnp.dot(x1pool_ref[1], w1, preferred_element_type=f32)
    i1 = jnp.maximum(cur1_a, cur1_b) + b1                         # (R2, C1)

    # --- per-shift validity masks for 'same'-padded conv2 --------------------
    # rows are b*L2 + l; shift s valid iff 0 <= l + s < L2.  NOTE: pltpu.roll
    # wraps rows across batch boundaries; these masks zero exactly those rows,
    # so masks and row layout are coupled — change them together.
    pos = lax.broadcasted_iota(jnp.int32, (R2, C1_OUT), 0) % L2
    shift_ok = [(pos + (k - PAD) >= 0) & (pos + (k - PAD) < L2)
                for k in range(KSIZE)]

    def lif(mem, cur):
        # snntorch Leaky, reset_mechanism="subtract":
        #   rst = H(mem_prev - thr); mem = beta*mem_prev + cur - rst*thr
        #   spk = H(mem - thr)
        rst = (mem > THRESHOLD).astype(f32)
        mem = BETA * mem + cur - rst * THRESHOLD
        spk = (mem > THRESHOLD).astype(f32)
        return spk, mem

    mem1 = jnp.zeros((R2, C1_OUT), f32)
    mem2 = jnp.zeros((R4, C2_OUT), f32)
    mem3 = jnp.zeros((BATCH, NUM_HIDDEN), f32)
    spk3_sum = jnp.zeros((BATCH, NUM_HIDDEN), f32)

    # NUM_STEPS=3 -> static unroll (see TODO at top for large step counts).
    for _ in range(NUM_STEPS):
        spk1, mem1 = lif(mem1, i1)                                # (R2, C1)

        # conv2: 5 masked rolls lane-concatenated into one 80-deep operand,
        # single MXU matmul (was 5 accumulating 16-deep matmuls).
        pieces = []
        for k in range(KSIZE):
            s = k - PAD
            if s == 0:
                pieces.append(spk1)
            else:
                sh = pltpu.roll(spk1, (-s) % R2, axis=0)
                pieces.append(jnp.where(shift_ok[k], sh, 0.0))
        lhs2 = jnp.concatenate(pieces, axis=1).astype(bf16)       # (R2, K*C1)
        cur2 = jnp.dot(lhs2, w2f, preferred_element_type=f32) + b2  # (R2, C2)

        # pool2: max-with-next-row in registers (roll rides the XLU slot),
        # single store, single stride-2 even-row read.  Row R2-1 wraps but is
        # odd, so it is never read back.
        c2_scr[...] = jnp.maximum(cur2, pltpu.roll(cur2, R2 - 1, axis=0))
        i2 = c2_scr[pl.ds(0, R4, stride=2), :]                    # (R4, C2)
        spk2, mem2 = lif(mem2, i2)

        # fc1: gather the L4 spatial slices (one row per sublane tile) and
        # lane-concatenate into one 256-deep operand -> one MXU matmul
        # (was 8 tiny M=2 matmuls).  Column order is l*C2 + ci; wfc1 was
        # pre-arranged accordingly on the host, so PyTorch's channel-major
        # flatten is respected with no in-kernel relayout.
        s2_scr[...] = spk2
        lhs3 = jnp.concatenate(
            [s2_scr[pl.ds(l, BATCH, stride=L4), :] for l in range(L4)],
            axis=1).astype(bf16)                                  # (B, L4*C2)
        cur3 = jnp.dot(lhs3, wfc1f, preferred_element_type=f32) + bfc1
        spk3, mem3 = lif(mem3, cur3)                              # (B, H)
        spk3_sum = spk3_sum + spk3

    # fc2 is linear: apply once to the summed spikes.  N=1, so do it on the
    # VPU + XLU (mul + lane reduce) instead of a 1-column MXU op; the fc2 bias
    # (added every step in PyTorch) becomes NUM_STEPS * bfc2.
    out = jnp.sum(spk3_sum * wfc2row, axis=1, keepdims=True) + NUM_STEPS * bfc2
    out_ref[...] = out                                            # (B, 1) store accepted


def snn_forward(x1pool, wslab, bias_slab):
    grid_spec = pltpu.PrefetchScalarGridSpec(
        num_scalar_prefetch=0,
        grid=(1,),
        in_specs=[
            pl.BlockSpec((2, R2, K_PAD), lambda i: (0, 0, 0)),           # im2col'd x
            pl.BlockSpec((WSLAB_ROWS, BIAS_LANES), lambda i: (0, 0)),    # weight slab
            pl.BlockSpec((BIAS_ROWS, BIAS_LANES), lambda i: (0, 0)),     # bias slab
        ],
        out_specs=pl.BlockSpec((BATCH, NUM_OUTPUTS), lambda i: (0, 0)),
        scratch_shapes=[
            pltpu.VMEM((R2, C2_OUT), jnp.float32),
            pltpu.VMEM((R4, C2_OUT), jnp.float32),
        ],
    )
    return pl.pallas_call(
        snn_kernel,
        out_shape=jax.ShapeDtypeStruct((BATCH, NUM_OUTPUTS), jnp.float32),
        grid_spec=grid_spec,
        compiler_params=pltpu.CompilerParams(dimension_semantics=("arbitrary",)),
    )(x1pool, wslab, bias_slab)


# ----------------------------------------------------------------------------
# Host-side packing (pure layout glue, done once outside the kernel)
# ----------------------------------------------------------------------------
def build_x1pool(x2d):
    """x2d: (B, L1).  Returns (2, B*L2, K_PAD) bf16-ready im2col at the two
    pool phases: out[p, b*L2 + l, k] = x[b, 2l + p - PAD + k] (zero padded)."""
    xp = jnp.pad(x2d, ((0, 0), (PAD, PAD)))                       # (B, L1 + 2*PAD)
    cols = []
    for k in range(KSIZE):
        v = xp[:, k:k + L1]                                       # [b, m] = xp[b, m+k]
        cols.append(v.reshape(BATCH, L2, 2))                      # [b, l, p]
    col = jnp.stack(cols, axis=-1)                                # (B, L2, 2, K)
    col = jnp.pad(col, ((0, 0), (0, 0), (0, 0), (0, K_PAD - KSIZE)))
    col = jnp.transpose(col, (2, 0, 1, 3))                        # (2, B, L2, K_PAD)
    return col.reshape(2, BATCH * L2, K_PAD)


def pack_weight_slab(w1_f, w2_f, wfc1_f):
    """One bf16 slab holding conv1 / conv2 / fc1 weights in matmul-ready layout."""
    w1m = jnp.zeros((K_PAD, C1_OUT), jnp.float32)
    w1m = w1m.at[:KSIZE, :].set(jnp.transpose(w1_f[:, 0, :], (1, 0)))          # (8, 16)
    w2flat = jnp.transpose(w2_f, (2, 1, 0)).reshape(KSIZE * C1_OUT, C2_OUT)    # (80, 32)
    wfc1flat = jnp.transpose(wfc1_f.reshape(NUM_HIDDEN, C2_OUT, L4),
                             (2, 1, 0)).reshape(FC1_IN, NUM_HIDDEN)            # (256, 32)
    slab = jnp.zeros((WSLAB_ROWS, BIAS_LANES), jnp.float32)
    slab = slab.at[W1_OFF:W1_OFF + K_PAD, 0:C1_OUT].set(w1m)
    slab = slab.at[W2_OFF:W2_OFF + KSIZE * C1_OUT, :].set(w2flat)
    slab = slab.at[FC1_OFF:FC1_OFF + FC1_IN, :].set(wfc1flat)
    return slab.astype(jnp.bfloat16)    # values already bf16-rounded -> exact cast


def pack_bias_slab(b1, b2, bfc1, wfc2, bfc2):
    slab = jnp.zeros((BIAS_ROWS, BIAS_LANES), jnp.float32)
    slab = slab.at[0, 0:C1_OUT].set(b1)
    slab = slab.at[1, 0:C2_OUT].set(b2)
    slab = slab.at[2, 0:NUM_HIDDEN].set(bfc1)
    slab = slab.at[3, 0:NUM_HIDDEN].set(wfc2[0])
    slab = slab.at[4, 0].set(bfc2[0])
    return slab


# ----------------------------------------------------------------------------
# Pure-JAX reference (direct conv / pool / LIF), for a sanity check
# ----------------------------------------------------------------------------
def reference_forward(x, w1, b1, w2, b2, wfc1, bfc1, wfc2, bfc2):
    f32 = jnp.float32

    def conv1d(inp, w, b):
        out = lax.conv_general_dilated(
            inp, w, window_strides=(1,), padding=((PAD, PAD),),
            dimension_numbers=("NCH", "OIH", "NCH"))
        return out + b[None, :, None]

    def pool(inp):
        Bn, C, L = inp.shape
        return jnp.max(inp.reshape(Bn, C, L // 2, 2), axis=-1)

    def lif(mem, cur):
        rst = (mem > THRESHOLD).astype(f32)
        mem = BETA * mem + cur - rst * THRESHOLD
        spk = (mem > THRESHOLD).astype(f32)
        return spk, mem

    Bn = x.shape[0]
    mem1 = jnp.zeros((Bn, C1_OUT, L2), f32)
    mem2 = jnp.zeros((Bn, C2_OUT, L4), f32)
    mem3 = jnp.zeros((Bn, NUM_HIDDEN), f32)
    out_sum = jnp.zeros((Bn, NUM_OUTPUTS), f32)
    for _ in range(NUM_STEPS):
        spk1, mem1 = lif(mem1, pool(conv1d(x, w1, b1)))
        spk2, mem2 = lif(mem2, pool(conv1d(spk1, w2, b2)))
        cur3 = spk2.reshape(Bn, -1) @ wfc1.T + bfc1
        spk3, mem3 = lif(mem3, cur3)
        out_sum = out_sum + spk3 @ wfc2.T + bfc2
    return out_sum


# ----------------------------------------------------------------------------
if __name__ == "__main__":
    key = jax.random.PRNGKey(0)
    ks = jax.random.split(key, 9)

    def uinit(k, shape, fan_in):
        bound = 1.0 / np.sqrt(fan_in)
        return jax.random.uniform(k, shape, jnp.float32, -bound, bound)

    # Deterministic synthetic parameters (PyTorch shapes)
    w1 = uinit(ks[0], (C1_OUT, 1, KSIZE), 1 * KSIZE)
    b1 = uinit(ks[1], (C1_OUT,), 1 * KSIZE)
    w2 = uinit(ks[2], (C2_OUT, C1_OUT, KSIZE), C1_OUT * KSIZE)
    b2 = uinit(ks[3], (C2_OUT,), C1_OUT * KSIZE)
    wfc1 = uinit(ks[4], (NUM_HIDDEN, FC1_IN), FC1_IN)
    bfc1 = uinit(ks[5], (NUM_HIDDEN,), FC1_IN)
    wfc2 = uinit(ks[6], (NUM_OUTPUTS, NUM_HIDDEN), NUM_HIDDEN)
    bfc2 = uinit(ks[7], (NUM_OUTPUTS,), NUM_HIDDEN)

    # Input: PyTorch NCL (batch, 1, num_inputs); scaled so spikes actually fire
    x = jax.random.normal(ks[8], (BATCH, 1, NUM_INPUTS), jnp.float32) * 3.0

    # bf16-round the MXU operands once; the reference sees the SAME rounded
    # values (cast back to f32) so spike decisions match.  Biases and fc2
    # (applied on the VPU) stay f32 and unrounded.
    to_f32 = lambda a: a.astype(jnp.bfloat16).astype(jnp.float32)
    x_f, w1_f, w2_f, wfc1_f = (to_f32(a) for a in (x, w1, w2, wfc1))

    # Kernel-side packing: 3 inputs total (im2col'd x, bf16 weight slab, f32 bias slab)
    x1pool = build_x1pool(x_f[:, 0, :]).astype(jnp.bfloat16)
    wslab = pack_weight_slab(w1_f, w2_f, wfc1_f)
    bias_slab = pack_bias_slab(b1, b2, bfc1, wfc2, bfc2)

    out = snn_forward(x1pool, wslab, bias_slab)
    out = jax.block_until_ready(out)

    ref = jax.block_until_ready(
        reference_forward(x_f, w1_f, b1, w2_f, b2, wfc1_f, bfc1, wfc2, bfc2))

    np.testing.assert_allclose(np.asarray(out), np.asarray(ref),
                               rtol=1e-3, atol=1e-3)
    print("KERNEL_OK")
</pallas_src>

<mosaic_0001>
module attributes {stable_mosaic.version = 11 : i64} {
  func.func @snn_kernel(%arg0: i32, %arg1: memref<2x64x8xbf16, #tpu.memory_space<vmem>>, %arg2: memref<344x32xbf16, #tpu.memory_space<vmem>>, %arg3: memref<8x32xf32, #tpu.memory_space<vmem>>, %arg4: memref<4x1xf32, #tpu.memory_space<vmem>>, %arg5: memref<64x32xf32, #tpu.memory_space<vmem>>, %arg6: memref<32x32xf32, #tpu.memory_space<vmem>>) attributes {dimension_semantics = [#tpu.dimension_semantics<arbitrary>], iteration_bounds = array<i64: 1>, scalar_prefetch = 0 : i64, scratch_operands = 2 : i64, tpu.core_type = #tpu.core_type<tc>, window_params = [{pipeline_mode = #tpu.pipeline_mode<synchronous>, transform_indices = @transform_0, window_bounds = array<i64: 2, 64, 8>}, {pipeline_mode = #tpu.pipeline_mode<synchronous>, transform_indices = @transform_1, window_bounds = array<i64: 344, 32>}, {pipeline_mode = #tpu.pipeline_mode<synchronous>, transform_indices = @transform_2, window_bounds = array<i64: 8, 32>}, {pipeline_mode = #tpu.pipeline_mode<synchronous>, transform_indices = @transform_3, window_bounds = array<i64: 4, 1>}]} {
    %c0 = arith.constant 0 : index
    %c0_0 = arith.constant 0 : index
    %0 = vector.load %arg2[%c0, %c0_0] : memref<344x32xbf16, #tpu.memory_space<vmem>>, vector<8x16xbf16>
    %c8 = arith.constant 8 : index
    %c0_1 = arith.constant 0 : index
    %1 = vector.load %arg2[%c8, %c0_1] : memref<344x32xbf16, #tpu.memory_space<vmem>>, vector<80x32xbf16>
    %c88 = arith.constant 88 : index
    %c0_2 = arith.constant 0 : index
    %2 = vector.load %arg2[%c88, %c0_2] : memref<344x32xbf16, #tpu.memory_space<vmem>>, vector<256x32xbf16>
    %c0_3 = arith.constant 0 : index
    %c0_4 = arith.constant 0 : index
    %3 = vector.load %arg3[%c0_3, %c0_4] : memref<8x32xf32, #tpu.memory_space<vmem>>, vector<1x16xf32>
    %c1 = arith.constant 1 : index
    %c0_5 = arith.constant 0 : index
    %4 = vector.load %arg3[%c1, %c0_5] : memref<8x32xf32, #tpu.memory_space<vmem>>, vector<1x32xf32>
    %c2 = arith.constant 2 : index
    %c0_6 = arith.constant 0 : index
    %5 = vector.load %arg3[%c2, %c0_6] : memref<8x32xf32, #tpu.memory_space<vmem>>, vector<1x32xf32>
    %c3 = arith.constant 3 : index
    %c0_7 = arith.constant 0 : index
    %6 = vector.load %arg3[%c3, %c0_7] : memref<8x32xf32, #tpu.memory_space<vmem>>, vector<1x32xf32>
    %c4 = arith.constant 4 : index
    %c0_8 = arith.constant 0 : index
    %7 = vector.load %arg3[%c4, %c0_8] : memref<8x32xf32, #tpu.memory_space<vmem>>, vector<1x1xf32>
    %c0_9 = arith.constant 0 : index
    %c0_10 = arith.constant 0 : index
    %c0_11 = arith.constant 0 : index
    %8 = vector.load %arg1[%c0_9, %c0_10, %c0_11] : memref<2x64x8xbf16, #tpu.memory_space<vmem>>, vector<1x64x8xbf16>
    %9 = vector.shape_cast %8 : vector<1x64x8xbf16> to vector<64x8xbf16>
    %cst = arith.constant dense<0.000000e+00> : vector<64x16xf32>
    %10 = tpu.matmul %9, %0, %cst {dimension_numbers = #tpu.dot_dimension_numbers<[1], [0], [0], [1], [0, 0, 1, 1], [], []>} : vector<64x8xbf16>, vector<8x16xbf16>, vector<64x16xf32> -> vector<64x16xf32>
    %c1_12 = arith.constant 1 : index
    %c0_13 = arith.constant 0 : index
    %c0_14 = arith.constant 0 : index
    %11 = vector.load %arg1[%c1_12, %c0_13, %c0_14] : memref<2x64x8xbf16, #tpu.memory_space<vmem>>, vector<1x64x8xbf16>
    %12 = vector.shape_cast %11 : vector<1x64x8xbf16> to vector<64x8xbf16>
    %cst_15 = arith.constant dense<0.000000e+00> : vector<64x16xf32>
    %13 = tpu.matmul %12, %0, %cst_15 {dimension_numbers = #tpu.dot_dimension_numbers<[1], [0], [0], [1], [0, 0, 1, 1], [], []>} : vector<64x8xbf16>, vector<8x16xbf16>, vector<64x16xf32> -> vector<64x16xf32>
    %14 = arith.maximumf %10, %13 : vector<64x16xf32>
    %15 = vector.broadcast %3 : vector<1x16xf32> to vector<64x16xf32>
    %16 = arith.addf %14, %15 : vector<64x16xf32>
    %17 = tpu.iota {dimensions = array<i32: 0>} : vector<64x16xi32>
    %c16_i32 = arith.constant 16 : i32
    %c0_i32 = arith.constant 0 : i32
    %18 = arith.cmpi eq, %c16_i32, %c0_i32 : i32
    %c1_i32 = arith.constant 1 : i32
    %19 = arith.select %18, %c1_i32, %c16_i32 : i32
    %20 = vector.broadcast %19 : i32 to vector<64x16xi32>
    %21 = arith.remsi %17, %20 : vector<64x16xi32>
    %c0_i32_16 = arith.constant 0 : i32
    %22 = vector.broadcast %c0_i32_16 : i32 to vector<64x16xi32>
    %23 = arith.cmpi ne, %21, %22 : vector<64x16xi32>
    %c0_i32_17 = arith.constant 0 : i32
    %24 = vector.broadcast %c0_i32_17 : i32 to vector<64x16xi32>
    %25 = arith.cmpi slt, %21, %24 : vector<64x16xi32>
    %c0_i32_18 = arith.constant 0 : i32
    %26 = arith.cmpi slt, %19, %c0_i32_18 : i32
    %27 = vector.broadcast %26 : i1 to vector<64x16xi1>
    %28 = vector.broadcast %27 : vector<64x16xi1> to vector<64x16xi1>
    %29 = arith.xori %25, %28 : vector<64x16xi1>
    %30 = arith.andi %29, %23 : vector<64x16xi1>
    %31 = vector.broadcast %19 : i32 to vector<64x16xi32>
    %32 = arith.addi %21, %31 : vector<64x16xi32>
    %33 = arith.select %30, %32, %21 : vector<64x16xi1>, vector<64x16xi32>
    %c-2_i32 = arith.constant -2 : i32
    %34 = vector.broadcast %c-2_i32 : i32 to vector<64x16xi32>
    %35 = arith.addi %33, %34 : vector<64x16xi32>
    %c0_i32_19 = arith.constant 0 : i32
    %36 = vector.broadcast %c0_i32_19 : i32 to vector<64x16xi32>
    %37 = arith.cmpi sge, %35, %36 : vector<64x16xi32>
    %c-2_i32_20 = arith.constant -2 : i32
    %38 = vector.broadcast %c-2_i32_20 : i32 to vector<64x16xi32>
    %39 = arith.addi %33, %38 : vector<64x16xi32>
    %c16_i32_21 = arith.constant 16 : i32
    %40 = vector.broadcast %c16_i32_21 : i32 to vector<64x16xi32>
    %41 = arith.cmpi slt, %39, %40 : vector<64x16xi32>
    %42 = arith.andi %37, %41 : vector<64x16xi1>
    %c-1_i32 = arith.constant -1 : i32
    %43 = vector.broadcast %c-1_i32 : i32 to vector<64x16xi32>
    %44 = arith.addi %33, %43 : vector<64x16xi32>
    %c0_i32_22 = arith.constant 0 : i32
    %45 = vector.broadcast %c0_i32_22 : i32 to vector<64x16xi32>
    %46 = arith.cmpi sge, %44, %45 : vector<64x16xi32>
    %c-1_i32_23 = arith.constant -1 : i32
    %47 = vector.broadcast %c-1_i32_23 : i32 to vector<64x16xi32>
    %48 = arith.addi %33, %47 : vector<64x16xi32>
    %c16_i32_24 = arith.constant 16 : i32
    %49 = vector.broadcast %c16_i32_24 : i32 to vector<64x16xi32>
    %50 = arith.cmpi slt, %48, %49 : vector<64x16xi32>
    %51 = arith.andi %46, %50 : vector<64x16xi1>
    %c1_i32_25 = arith.constant 1 : i32
    %52 = vector.broadcast %c1_i32_25 : i32 to vector<64x16xi32>
    %53 = arith.addi %33, %52 : vector<64x16xi32>
    %c0_i32_26 = arith.constant 0 : i32
    %54 = vector.broadcast %c0_i32_26 : i32 to vector<64x16xi32>
    %55 = arith.cmpi sge, %53, %54 : vector<64x16xi32>
    %c1_i32_27 = arith.constant 1 : i32
    %56 = vector.broadcast %c1_i32_27 : i32 to vector<64x16xi32>
    %57 = arith.addi %33, %56 : vector<64x16xi32>
    %c16_i32_28 = arith.constant 16 : i32
    %58 = vector.broadcast %c16_i32_28 : i32 to vector<64x16xi32>
    %59 = arith.cmpi slt, %57, %58 : vector<64x16xi32>
    %60 = arith.andi %55, %59 : vector<64x16xi1>
    %c2_i32 = arith.constant 2 : i32
    %61 = vector.broadcast %c2_i32 : i32 to vector<64x16xi32>
    %62 = arith.addi %33, %61 : vector<64x16xi32>
    %c0_i32_29 = arith.constant 0 : i32
    %63 = vector.broadcast %c0_i32_29 : i32 to vector<64x16xi32>
    %64 = arith.cmpi sge, %62, %63 : vector<64x16xi32>
    %c2_i32_30 = arith.constant 2 : i32
    %65 = vector.broadcast %c2_i32_30 : i32 to vector<64x16xi32>
    %66 = arith.addi %33, %65 : vector<64x16xi32>
    %c16_i32_31 = arith.constant 16 : i32
    %67 = vector.broadcast %c16_i32_31 : i32 to vector<64x16xi32>
    %68 = arith.cmpi slt, %66, %67 : vector<64x16xi32>
    %69 = arith.andi %64, %68 : vector<64x16xi1>
    %cst_32 = arith.constant 0.000000e+00 : f32
    %70 = vector.broadcast %cst_32 : f32 to vector<64x16xf32>
    %cst_33 = arith.constant 0.000000e+00 : f32
    %71 = vector.broadcast %cst_33 : f32 to vector<32x32xf32>
    %cst_34 = arith.constant 0.000000e+00 : f32
    %72 = vector.broadcast %cst_34 : f32 to vector<4x32xf32>
    %cst_35 = arith.constant 0.000000e+00 : f32
    %73 = vector.broadcast %cst_35 : f32 to vector<4x32xf32>
    %cst_36 = arith.constant 1.000000e+00 : f32
    %74 = vector.broadcast %cst_36 : f32 to vector<64x16xf32>
    %75 = arith.cmpf ogt, %70, %74 : vector<64x16xf32>
    %76 = arith.extui %75 : vector<64x16xi1> to vector<64x16xi32>
    %77 = arith.sitofp %76 : vector<64x16xi32> to vector<64x16xf32>
    %cst_37 = arith.constant 0.899999976 : f32
    %78 = vector.broadcast %cst_37 : f32 to vector<64x16xf32>
    %79 = arith.mulf %78, %70 : vector<64x16xf32>
    %80 = arith.addf %79, %16 : vector<64x16xf32>
    %cst_38 = arith.constant 1.000000e+00 : f32
    %81 = vector.broadcast %cst_38 : f32 to vector<64x16xf32>
    %82 = arith.mulf %77, %81 : vector<64x16xf32>
    %83 = arith.subf %80, %82 : vector<64x16xf32>
    %cst_39 = arith.constant 1.000000e+00 : f32
    %84 = vector.broadcast %cst_39 : f32 to vector<64x16xf32>
    %85 = arith.cmpf ogt, %83, %84 : vector<64x16xf32>
    %86 = arith.extui %85 : vector<64x16xi1> to vector<64x16xi32>
    %87 = arith.sitofp %86 : vector<64x16xi32> to vector<64x16xf32>
    %c2_i32_40 = arith.constant 2 : i32
    %88 = tpu.dynamic_rotate %87 by %c2_i32_40 dim 0 : vector<64x16xf32>, i32 -> vector<64x16xf32>
    %cst_41 = arith.constant 0.000000e+00 : f32
    %89 = vector.broadcast %cst_41 : f32 to vector<64x16xf32>
    %90 = arith.select %42, %88, %89 : vector<64x16xi1>, vector<64x16xf32>
    %c1_i32_42 = arith.constant 1 : i32
    %91 = tpu.dynamic_rotate %87 by %c1_i32_42 dim 0 : vector<64x16xf32>, i32 -> vector<64x16xf32>
    %cst_43 = arith.constant 0.000000e+00 : f32
    %92 = vector.broadcast %cst_43 : f32 to vector<64x16xf32>
    %93 = arith.select %51, %91, %92 : vector<64x16xi1>, vector<64x16xf32>
    %c63_i32 = arith.constant 63 : i32
    %94 = tpu.dynamic_rotate %87 by %c63_i32 dim 0 : vector<64x16xf32>, i32 -> vector<64x16xf32>
    %cst_44 = arith.constant 0.000000e+00 : f32
    %95 = vector.broadcast %cst_44 : f32 to vector<64x16xf32>
    %96 = arith.select %60, %94, %95 : vector<64x16xi1>, vector<64x16xf32>
    %c62_i32 = arith.constant 62 : i32
    %97 = tpu.dynamic_rotate %87 by %c62_i32 dim 0 : vector<64x16xf32>, i32 -> vector<64x16xf32>
    %cst_45 = arith.constant 0.000000e+00 : f32
    %98 = vector.broadcast %cst_45 : f32 to vector<64x16xf32>
    %99 = arith.select %69, %97, %98 : vector<64x16xi1>, vector<64x16xf32>
    %100 = tpu.concatenate %90, %93, %87, %96, %99 in 1 : vector<64x16xf32>, vector<64x16xf32>, vector<64x16xf32>, vector<64x16xf32>, vector<64x16xf32> -> vector<64x80xf32>
    %101 = arith.truncf %100 : vector<64x80xf32> to vector<64x80xbf16>
    %cst_46 = arith.constant dense<0.000000e+00> : vector<64x32xf32>
    %102 = tpu.matmul %101, %1, %cst_46 {dimension_numbers = #tpu.dot_dimension_numbers<[1], [0], [0], [1], [0, 0, 1, 1], [], []>} : vector<64x80xbf16>, vector<80x32xbf16>, vector<64x32xf32> -> vector<64x32xf32>
    %103 = vector.broadcast %4 : vector<1x32xf32> to vector<64x32xf32>
    %104 = arith.addf %102, %103 : vector<64x32xf32>
    %c63_i32_47 = arith.constant 63 : i32
    %105 = tpu.dynamic_rotate %104 by %c63_i32_47 dim 0 : vector<64x32xf32>, i32 -> vector<64x32xf32>
    %106 = arith.maximumf %104, %105 : vector<64x32xf32>
    %c0_48 = arith.constant 0 : index
    %c0_49 = arith.constant 0 : index
    %107 = vector.load %arg5[%c0_48, %c0_49] : memref<64x32xf32, #tpu.memory_space<vmem>>, vector<64x32xf32>
    tpu.vector_store %arg5[%c0_48, %c0_49], %106 {strides = array<i32>} : memref<64x32xf32, #tpu.memory_space<vmem>>, vector<64x32xf32>,
    %c0_50 = arith.constant 0 : index
    %c0_51 = arith.constant 0 : index
    %108 = tpu.strided_load %arg5[%c0_50, %c0_51] {strides = array<i32: 2, 1>} : memref<64x32xf32, #tpu.memory_space<vmem>>, vector<32x32xf32>
    %cst_52 = arith.constant 1.000000e+00 : f32
    %109 = vector.broadcast %cst_52 : f32 to vector<32x32xf32>
    %110 = arith.cmpf ogt, %71, %109 : vector<32x32xf32>
    %111 = arith.extui %110 : vector<32x32xi1> to vector<32x32xi32>
    %112 = arith.sitofp %111 : vector<32x32xi32> to vector<32x32xf32>
    %cst_53 = arith.constant 0.899999976 : f32
    %113 = vector.broadcast %cst_53 : f32 to vector<32x32xf32>
    %114 = arith.mulf %113, %71 : vector<32x32xf32>
    %115 = arith.addf %114, %108 : vector<32x32xf32>
    %cst_54 = arith.constant 1.000000e+00 : f32
    %116 = vector.broadcast %cst_54 : f32 to vector<32x32xf32>
    %117 = arith.mulf %112, %116 : vector<32x32xf32>
    %118 = arith.subf %115, %117 : vector<32x32xf32>
    %cst_55 = arith.constant 1.000000e+00 : f32
    %119 = vector.broadcast %cst_55 : f32 to vector<32x32xf32>
    %120 = arith.cmpf ogt, %118, %119 : vector<32x32xf32>
    %121 = arith.extui %120 : vector<32x32xi1> to vector<32x32xi32>
    %122 = arith.sitofp %121 : vector<32x32xi32> to vector<32x32xf32>
    %c0_56 = arith.constant 0 : index
    %c0_57 = arith.constant 0 : index
    %123 = vector.load %arg6[%c0_56, %c0_57] : memref<32x32xf32, #tpu.memory_space<vmem>>, vector<32x32xf32>
    tpu.vector_store %arg6[%c0_56, %c0_57], %122 {strides = array<i32>} : memref<32x32xf32, #tpu.memory_space<vmem>>, vector<32x32xf32>,
    %c0_58 = arith.constant 0 : index
    %c0_59 = arith.constant 0 : index
    %124 = tpu.strided_load %arg6[%c0_58, %c0_59] {strides = array<i32: 8, 1>} : memref<32x32xf32, #tpu.memory_space<vmem>>, vector<4x32xf32>
    %c1_60 = arith.constant 1 : index
    %c0_61 = arith.constant 0 : index
    %125 = tpu.strided_load %arg6[%c1_60, %c0_61] {strides = array<i32: 8, 1>} : memref<32x32xf32, #tpu.memory_space<vmem>>, vector<4x32xf32>
    %c2_62 = arith.constant 2 : index
    %c0_63 = arith.constant 0 : index
    %126 = tpu.strided_load %arg6[%c2_62, %c0_63] {strides = array<i32: 8, 1>} : memref<32x32xf32, #tpu.memory_space<vmem>>, vector<4x32xf32>
    %c3_64 = arith.constant 3 : index
    %c0_65 = arith.constant 0 : index
    %127 = tpu.strided_load %arg6[%c3_64, %c0_65] {strides = array<i32: 8, 1>} : memref<32x32xf32, #tpu.memory_space<vmem>>, vector<4x32xf32>
    %c4_66 = arith.constant 4 : index
    %c0_67 = arith.constant 0 : index
    %128 = tpu.strided_load %arg6[%c4_66, %c0_67] {strides = array<i32: 8, 1>} : memref<32x32xf32, #tpu.memory_space<vmem>>, vector<4x32xf32>
    %c5 = arith.constant 5 : index
    %c0_68 = arith.constant 0 : index
    %129 = tpu.strided_load %arg6[%c5, %c0_68] {strides = array<i32: 8, 1>} : memref<32x32xf32, #tpu.memory_space<vmem>>, vector<4x32xf32>
    %c6 = arith.constant 6 : index
    %c0_69 = arith.constant 0 : index
    %130 = tpu.strided_load %arg6[%c6, %c0_69] {strides = array<i32: 8, 1>} : memref<32x32xf32, #tpu.memory_space<vmem>>, vector<4x32xf32>
    %c7 = arith.constant 7 : index
    %c0_70 = arith.constant 0 : index
    %131 = tpu.strided_load %arg6[%c7, %c0_70] {strides = array<i32: 8, 1>} : memref<32x32xf32, #tpu.memory_space<vmem>>, vector<4x32xf32>
    %132 = tpu.concatenate %124, %125, %126, %127, %128, %129, %130, %131 in 1 : vector<4x32xf32>, vector<4x32xf32>, vector<4x32xf32>, vector<4x32xf32>, vector<4x32xf32>, vector<4x32xf32>, vector<4x32xf32>, vector<4x32xf32> -> vector<4x256xf32>
    %133 = arith.truncf %132 : vector<4x256xf32> to vector<4x256xbf16>
    %cst_71 = arith.constant dense<0.000000e+00> : vector<4x32xf32>
    %134 = tpu.matmul %133, %2, %cst_71 {dimension_numbers = #tpu.dot_dimension_numbers<[1], [0], [0], [1], [0, 0, 1, 1], [], []>} : vector<4x256xbf16>, vector<256x32xbf16>, vector<4x32xf32> -> vector<4x32xf32>
    %135 = vector.broadcast %5 : vector<1x32xf32> to vector<4x32xf32>
    %136 = arith.addf %134, %135 : vector<4x32xf32>
    %cst_72 = arith.constant 1.000000e+00 : f32
    %137 = vector.broadcast %cst_72 : f32 to vector<4x32xf32>
    %138 = arith.cmpf ogt, %72, %137 : vector<4x32xf32>
    %139 = arith.extui %138 : vector<4x32xi1> to vector<4x32xi32>
    %140 = arith.sitofp %139 : vector<4x32xi32> to vector<4x32xf32>
    %cst_73 = arith.constant 0.899999976 : f32
    %141 = vector.broadcast %cst_73 : f32 to vector<4x32xf32>
    %142 = arith.mulf %141, %72 : vector<4x32xf32>
    %143 = arith.addf %142, %136 : vector<4x32xf32>
    %cst_74 = arith.constant 1.000000e+00 : f32
    %144 = vector.broadcast %cst_74 : f32 to vector<4x32xf32>
    %145 = arith.mulf %140, %144 : vector<4x32xf32>
    %146 = arith.subf %143, %145 : vector<4x32xf32>
    %cst_75 = arith.constant 1.000000e+00 : f32
    %147 = vector.broadcast %cst_75 : f32 to vector<4x32xf32>
    %148 = arith.cmpf ogt, %146, %147 : vector<4x32xf32>
    %149 = arith.extui %148 : vector<4x32xi1> to vector<4x32xi32>
    %150 = arith.sitofp %149 : vector<4x32xi32> to vector<4x32xf32>
    %151 = arith.addf %73, %150 : vector<4x32xf32>
    %cst_76 = arith.constant 1.000000e+00 : f32
    %152 = vector.broadcast %cst_76 : f32 to vector<64x16xf32>
    %153 = arith.cmpf ogt, %83, %152 : vector<64x16xf32>
    %154 = arith.extui %153 : vector<64x16xi1> to vector<64x16xi32>
    %155 = arith.sitofp %154 : vector<64x16xi32> to vector<64x16xf32>
    %cst_77 = arith.constant 0.899999976 : f32
    %156 = vector.broadcast %cst_77 : f32 to vector<64x16xf32>
    %157 = arith.mulf %156, %83 : vector<64x16xf32>
    %158 = arith.addf %157, %16 : vector<64x16xf32>
    %cst_78 = arith.constant 1.000000e+00 : f32
    %159 = vector.broadcast %cst_78 : f32 to vector<64x16xf32>
    %160 = arith.mulf %155, %159 : vector<64x16xf32>
    %161 = arith.subf %158, %160 : vector<64x16xf32>
    %cst_79 = arith.constant 1.000000e+00 : f32
    %162 = vector.broadcast %cst_79 : f32 to vector<64x16xf32>
    %163 = arith.cmpf ogt, %161, %162 : vector<64x16xf32>
    %164 = arith.extui %163 : vector<64x16xi1> to vector<64x16xi32>
    %165 = arith.sitofp %164 : vector<64x16xi32> to vector<64x16xf32>
    %c2_i32_80 = arith.constant 2 : i32
    %166 = tpu.dynamic_rotate %165 by %c2_i32_80 dim 0 : vector<64x16xf32>, i32 -> vector<64x16xf32>
    %cst_81 = arith.constant 0.000000e+00 : f32
    %167 = vector.broadcast %cst_81 : f32 to vector<64x16xf32>
    %168 = arith.select %42, %166, %167 : vector<64x16xi1>, vector<64x16xf32>
    %c1_i32_82 = arith.constant 1 : i32
    %169 = tpu.dynamic_rotate %165 by %c1_i32_82 dim 0 : vector<64x16xf32>, i32 -> vector<64x16xf32>
    %cst_83 = arith.constant 0.000000e+00 : f32
    %170 = vector.broadcast %cst_83 : f32 to vector<64x16xf32>
    %171 = arith.select %51, %169, %170 : vector<64x16xi1>, vector<64x16xf32>
    %c63_i32_84 = arith.constant 63 : i32
    %172 = tpu.dynamic_rotate %165 by %c63_i32_84 dim 0 : vector<64x16xf32>, i32 -> vector<64x16xf32>
    %cst_85 = arith.constant 0.000000e+00 : f32
    %173 = vector.broadcast %cst_85 : f32 to vector<64x16xf32>
    %174 = arith.select %60, %172, %173 : vector<64x16xi1>, vector<64x16xf32>
    %c62_i32_86 = arith.constant 62 : i32
    %175 = tpu.dynamic_rotate %165 by %c62_i32_86 dim 0 : vector<64x16xf32>, i32 -> vector<64x16xf32>
    %cst_87 = arith.constant 0.000000e+00 : f32
    %176 = vector.broadcast %cst_87 : f32 to vector<64x16xf32>
    %177 = arith.select %69, %175, %176 : vector<64x16xi1>, vector<64x16xf32>
    %178 = tpu.concatenate %168, %171, %165, %174, %177 in 1 : vector<64x16xf32>, vector<64x16xf32>, vector<64x16xf32>, vector<64x16xf32>, vector<64x16xf32> -> vector<64x80xf32>
    %179 = arith.truncf %178 : vector<64x80xf32> to vector<64x80xbf16>
    %cst_88 = arith.constant dense<0.000000e+00> : vector<64x32xf32>
    %180 = tpu.matmul %179, %1, %cst_88 {dimension_numbers = #tpu.dot_dimension_numbers<[1], [0], [0], [1], [0, 0, 1, 1], [], []>} : vector<64x80xbf16>, vector<80x32xbf16>, vector<64x32xf32> -> vector<64x32xf32>
    %181 = vector.broadcast %4 : vector<1x32xf32> to vector<64x32xf32>
    %182 = arith.addf %180, %181 : vector<64x32xf32>
    %c63_i32_89 = arith.constant 63 : i32
    %183 = tpu.dynamic_rotate %182 by %c63_i32_89 dim 0 : vector<64x32xf32>, i32 -> vector<64x32xf32>
    %184 = arith.maximumf %182, %183 : vector<64x32xf32>
    %c0_90 = arith.constant 0 : index
    %c0_91 = arith.constant 0 : index
    %185 = vector.load %arg5[%c0_90, %c0_91] : memref<64x32xf32, #tpu.memory_space<vmem>>, vector<64x32xf32>
    tpu.vector_store %arg5[%c0_90, %c0_91], %184 {strides = array<i32>} : memref<64x32xf32, #tpu.memory_space<vmem>>, vector<64x32xf32>,
    %c0_92 = arith.constant 0 : index
    %c0_93 = arith.constant 0 : index
    %186 = tpu.strided_load %arg5[%c0_92, %c0_93] {strides = array<i32: 2, 1>} : memref<64x32xf32, #tpu.memory_space<vmem>>, vector<32x32xf32>
    %cst_94 = arith.constant 1.000000e+00 : f32
    %187 = vector.broadcast %cst_94 : f32 to vector<32x32xf32>
    %188 = arith.cmpf ogt, %118, %187 : vector<32x32xf32>
    %189 = arith.extui %188 : vector<32x32xi1> to vector<32x32xi32>
    %190 = arith.sitofp %189 : vector<32x32xi32> to vector<32x32xf32>
    %cst_95 = arith.constant 0.899999976 : f32
    %191 = vector.broadcast %cst_95 : f32 to vector<32x32xf32>
    %192 = arith.mulf %191, %118 : vector<32x32xf32>
    %193 = arith.addf %192, %186 : vector<32x32xf32>
    %cst_96 = arith.constant 1.000000e+00 : f32
    %194 = vector.broadcast %cst_96 : f32 to vector<32x32xf32>
    %195 = arith.mulf %190, %194 : vector<32x32xf32>
    %196 = arith.subf %193, %195 : vector<32x32xf32>
    %cst_97 = arith.constant 1.000000e+00 : f32
    %197 = vector.broadcast %cst_97 : f32 to vector<32x32xf32>
    %198 = arith.cmpf ogt, %196, %197 : vector<32x32xf32>
    %199 = arith.extui %198 : vector<32x32xi1> to vector<32x32xi32>
    %200 = arith.sitofp %199 : vector<32x32xi32> to vector<32x32xf32>
    %c0_98 = arith.constant 0 : index
    %c0_99 = arith.constant 0 : index
    %201 = vector.load %arg6[%c0_98, %c0_99] : memref<32x32xf32, #tpu.memory_space<vmem>>, vector<32x32xf32>
    tpu.vector_store %arg6[%c0_98, %c0_99], %200 {strides = array<i32>} : memref<32x32xf32, #tpu.memory_space<vmem>>, vector<32x32xf32>,
    %c0_100 = arith.constant 0 : index
    %c0_101 = arith.constant 0 : index
    %202 = tpu.strided_load %arg6[%c0_100, %c0_101] {strides = array<i32: 8, 1>} : memref<32x32xf32, #tpu.memory_space<vmem>>, vector<4x32xf32>
    %c1_102 = arith.constant 1 : index
    %c0_103 = arith.constant 0 : index
    %203 = tpu.strided_load %arg6[%c1_102, %c0_103] {strides = array<i32: 8, 1>} : memref<32x32xf32, #tpu.memory_space<vmem>>, vector<4x32xf32>
    %c2_104 = arith.constant 2 : index
    %c0_105 = arith.constant 0 : index
    %204 = tpu.strided_load %arg6[%c2_104, %c0_105] {strides = array<i32: 8, 1>} : memref<32x32xf32, #tpu.memory_space<vmem>>, vector<4x32xf32>
    %c3_106 = arith.constant 3 : index
    %c0_107 = arith.constant 0 : index
    %205 = tpu.strided_load %arg6[%c3_106, %c0_107] {strides = array<i32: 8, 1>} : memref<32x32xf32, #tpu.memory_space<vmem>>, vector<4x32xf32>
    %c4_108 = arith.constant 4 : index
    %c0_109 = arith.constant 0 : index
    %206 = tpu.strided_load %arg6[%c4_108, %c0_109] {strides = array<i32: 8, 1>} : memref<32x32xf32, #tpu.memory_space<vmem>>, vector<4x32xf32>
    %c5_110 = arith.constant 5 : index
    %c0_111 = arith.constant 0 : index
    %207 = tpu.strided_load %arg6[%c5_110, %c0_111] {strides = array<i32: 8, 1>} : memref<32x32xf32, #tpu.memory_space<vmem>>, vector<4x32xf32>
    %c6_112 = arith.constant 6 : index
    %c0_113 = arith.constant 0 : index
    %208 = tpu.strided_load %arg6[%c6_112, %c0_113] {strides = array<i32: 8, 1>} : memref<32x32xf32, #tpu.memory_space<vmem>>, vector<4x32xf32>
    %c7_114 = arith.constant 7 : index
    %c0_115 = arith.constant 0 : index
    %209 = tpu.strided_load %arg6[%c7_114, %c0_115] {strides = array<i32: 8, 1>} : memref<32x32xf32, #tpu.memory_space<vmem>>, vector<4x32xf32>
    %210 = tpu.concatenate %202, %203, %204, %205, %206, %207, %208, %209 in 1 : vector<4x32xf32>, vector<4x32xf32>, vector<4x32xf32>, vector<4x32xf32>, vector<4x32xf32>, vector<4x32xf32>, vector<4x32xf32>, vector<4x32xf32> -> vector<4x256xf32>
    %211 = arith.truncf %210 : vector<4x256xf32> to vector<4x256xbf16>
    %cst_116 = arith.constant dense<0.000000e+00> : vector<4x32xf32>
    %212 = tpu.matmul %211, %2, %cst_116 {dimension_numbers = #tpu.dot_dimension_numbers<[1], [0], [0], [1], [0, 0, 1, 1], [], []>} : vector<4x256xbf16>, vector<256x32xbf16>, vector<4x32xf32> -> vector<4x32xf32>
    %213 = vector.broadcast %5 : vector<1x32xf32> to vector<4x32xf32>
    %214 = arith.addf %212, %213 : vector<4x32xf32>
    %cst_117 = arith.constant 1.000000e+00 : f32
    %215 = vector.broadcast %cst_117 : f32 to vector<4x32xf32>
    %216 = arith.cmpf ogt, %146, %215 : vector<4x32xf32>
    %217 = arith.extui %216 : vector<4x32xi1> to vector<4x32xi32>
    %218 = arith.sitofp %217 : vector<4x32xi32> to vector<4x32xf32>
    %cst_118 = arith.constant 0.899999976 : f32
    %219 = vector.broadcast %cst_118 : f32 to vector<4x32xf32>
    %220 = arith.mulf %219, %146 : vector<4x32xf32>
    %221 = arith.addf %220, %214 : vector<4x32xf32>
    %cst_119 = arith.constant 1.000000e+00 : f32
    %222 = vector.broadcast %cst_119 : f32 to vector<4x32xf32>
    %223 = arith.mulf %218, %222 : vector<4x32xf32>
    %224 = arith.subf %221, %223 : vector<4x32xf32>
    %cst_120 = arith.constant 1.000000e+00 : f32
    %225 = vector.broadcast %cst_120 : f32 to vector<4x32xf32>
    %226 = arith.cmpf ogt, %224, %225 : vector<4x32xf32>
    %227 = arith.extui %226 : vector<4x32xi1> to vector<4x32xi32>
    %228 = arith.sitofp %227 : vector<4x32xi32> to vector<4x32xf32>
    %229 = arith.addf %151, %228 : vector<4x32xf32>
    %cst_121 = arith.constant 1.000000e+00 : f32
    %230 = vector.broadcast %cst_121 : f32 to vector<64x16xf32>
    %231 = arith.cmpf ogt, %161, %230 : vector<64x16xf32>
    %232 = arith.extui %231 : vector<64x16xi1> to vector<64x16xi32>
    %233 = arith.sitofp %232 : vector<64x16xi32> to vector<64x16xf32>
    %cst_122 = arith.constant 0.899999976 : f32
    %234 = vector.broadcast %cst_122 : f32 to vector<64x16xf32>
    %235 = arith.mulf %234, %161 : vector<64x16xf32>
    %236 = arith.addf %235, %16 : vector<64x16xf32>
    %cst_123 = arith.constant 1.000000e+00 : f32
    %237 = vector.broadcast %cst_123 : f32 to vector<64x16xf32>
    %238 = arith.mulf %233, %237 : vector<64x16xf32>
    %239 = arith.subf %236, %238 : vector<64x16xf32>
    %cst_124 = arith.constant 1.000000e+00 : f32
    %240 = vector.broadcast %cst_124 : f32 to vector<64x16xf32>
    %241 = arith.cmpf ogt, %239, %240 : vector<64x16xf32>
    %242 = arith.extui %241 : vector<64x16xi1> to vector<64x16xi32>
    %243 = arith.sitofp %242 : vector<64x16xi32> to vector<64x16xf32>
    %c2_i32_125 = arith.constant 2 : i32
    %244 = tpu.dynamic_rotate %243 by %c2_i32_125 dim 0 : vector<64x16xf32>, i32 -> vector<64x16xf32>
    %cst_126 = arith.constant 0.000000e+00 : f32
    %245 = vector.broadcast %cst_126 : f32 to vector<64x16xf32>
    %246 = arith.select %42, %244, %245 : vector<64x16xi1>, vector<64x16xf32>
    %c1_i32_127 = arith.constant 1 : i32
    %247 = tpu.dynamic_rotate %243 by %c1_i32_127 dim 0 : vector<64x16xf32>, i32 -> vector<64x16xf32>
    %cst_128 = arith.constant 0.000000e+00 : f32
    %248 = vector.broadcast %cst_128 : f32 to vector<64x16xf32>
    %249 = arith.select %51, %247, %248 : vector<64x16xi1>, vector<64x16xf32>
    %c63_i32_129 = arith.constant 63 : i32
    %250 = tpu.dynamic_rotate %243 by %c63_i32_129 dim 0 : vector<64x16xf32>, i32 -> vector<64x16xf32>
    %cst_130 = arith.constant 0.000000e+00 : f32
    %251 = vector.broadcast %cst_130 : f32 to vector<64x16xf32>
    %252 = arith.select %60, %250, %251 : vector<64x16xi1>, vector<64x16xf32>
    %c62_i32_131 = arith.constant 62 : i32
    %253 = tpu.dynamic_rotate %243 by %c62_i32_131 dim 0 : vector<64x16xf32>, i32 -> vector<64x16xf32>
    %cst_132 = arith.constant 0.000000e+00 : f32
    %254 = vector.broadcast %cst_132 : f32 to vector<64x16xf32>
    %255 = arith.select %69, %253, %254 : vector<64x16xi1>, vector<64x16xf32>
    %256 = tpu.concatenate %246, %249, %243, %252, %255 in 1 : vector<64x16xf32>, vector<64x16xf32>, vector<64x16xf32>, vector<64x16xf32>, vector<64x16xf32> -> vector<64x80xf32>
    %257 = arith.truncf %256 : vector<64x80xf32> to vector<64x80xbf16>
    %cst_133 = arith.constant dense<0.000000e+00> : vector<64x32xf32>
    %258 = tpu.matmul %257, %1, %cst_133 {dimension_numbers = #tpu.dot_dimension_numbers<[1], [0], [0], [1], [0, 0, 1, 1], [], []>} : vector<64x80xbf16>, vector<80x32xbf16>, vector<64x32xf32> -> vector<64x32xf32>
    %259 = vector.broadcast %4 : vector<1x32xf32> to vector<64x32xf32>
    %260 = arith.addf %258, %259 : vector<64x32xf32>
    %c63_i32_134 = arith.constant 63 : i32
    %261 = tpu.dynamic_rotate %260 by %c63_i32_134 dim 0 : vector<64x32xf32>, i32 -> vector<64x32xf32>
    %262 = arith.maximumf %260, %261 : vector<64x32xf32>
    %c0_135 = arith.constant 0 : index
    %c0_136 = arith.constant 0 : index
    %263 = vector.load %arg5[%c0_135, %c0_136] : memref<64x32xf32, #tpu.memory_space<vmem>>, vector<64x32xf32>
    tpu.vector_store %arg5[%c0_135, %c0_136], %262 {strides = array<i32>} : memref<64x32xf32, #tpu.memory_space<vmem>>, vector<64x32xf32>,
    %c0_137 = arith.constant 0 : index
    %c0_138 = arith.constant 0 : index
    %264 = tpu.strided_load %arg5[%c0_137, %c0_138] {strides = array<i32: 2, 1>} : memref<64x32xf32, #tpu.memory_space<vmem>>, vector<32x32xf32>
    %cst_139 = arith.constant 1.000000e+00 : f32
    %265 = vector.broadcast %cst_139 : f32 to vector<32x32xf32>
    %266 = arith.cmpf ogt, %196, %265 : vector<32x32xf32>
    %267 = arith.extui %266 : vector<32x32xi1> to vector<32x32xi32>
    %268 = arith.sitofp %267 : vector<32x32xi32> to vector<32x32xf32>
    %cst_140 = arith.constant 0.899999976 : f32
    %269 = vector.broadcast %cst_140 : f32 to vector<32x32xf32>
    %270 = arith.mulf %269, %196 : vector<32x32xf32>
    %271 = arith.addf %270, %264 : vector<32x32xf32>
    %cst_141 = arith.constant 1.000000e+00 : f32
    %272 = vector.broadcast %cst_141 : f32 to vector<32x32xf32>
    %273 = arith.mulf %268, %272 : vector<32x32xf32>
    %274 = arith.subf %271, %273 : vector<32x32xf32>
    %cst_142 = arith.constant 1.000000e+00 : f32
    %275 = vector.broadcast %cst_142 : f32 to vector<32x32xf32>
    %276 = arith.cmpf ogt, %274, %275 : vector<32x32xf32>
    %277 = arith.extui %276 : vector<32x32xi1> to vector<32x32xi32>
    %278 = arith.sitofp %277 : vector<32x32xi32> to vector<32x32xf32>
    %c0_143 = arith.constant 0 : index
    %c0_144 = arith.constant 0 : index
    %279 = vector.load %arg6[%c0_143, %c0_144] : memref<32x32xf32, #tpu.memory_space<vmem>>, vector<32x32xf32>
    tpu.vector_store %arg6[%c0_143, %c0_144], %278 {strides = array<i32>} : memref<32x32xf32, #tpu.memory_space<vmem>>, vector<32x32xf32>,
    %c0_145 = arith.constant 0 : index
    %c0_146 = arith.constant 0 : index
    %280 = tpu.strided_load %arg6[%c0_145, %c0_146] {strides = array<i32: 8, 1>} : memref<32x32xf32, #tpu.memory_space<vmem>>, vector<4x32xf32>
    %c1_147 = arith.constant 1 : index
    %c0_148 = arith.constant 0 : index
    %281 = tpu.strided_load %arg6[%c1_147, %c0_148] {strides = array<i32: 8, 1>} : memref<32x32xf32, #tpu.memory_space<vmem>>, vector<4x32xf32>
    %c2_149 = arith.constant 2 : index
    %c0_150 = arith.constant 0 : index
    %282 = tpu.strided_load %arg6[%c2_149, %c0_150] {strides = array<i32: 8, 1>} : memref<32x32xf32, #tpu.memory_space<vmem>>, vector<4x32xf32>
    %c3_151 = arith.constant 3 : index
    %c0_152 = arith.constant 0 : index
    %283 = tpu.strided_load %arg6[%c3_151, %c0_152] {strides = array<i32: 8, 1>} : memref<32x32xf32, #tpu.memory_space<vmem>>, vector<4x32xf32>
    %c4_153 = arith.constant 4 : index
    %c0_154 = arith.constant 0 : index
    %284 = tpu.strided_load %arg6[%c4_153, %c0_154] {strides = array<i32: 8, 1>} : memref<32x32xf32, #tpu.memory_space<vmem>>, vector<4x32xf32>
    %c5_155 = arith.constant 5 : index
    %c0_156 = arith.constant 0 : index
    %285 = tpu.strided_load %arg6[%c5_155, %c0_156] {strides = array<i32: 8, 1>} : memref<32x32xf32, #tpu.memory_space<vmem>>, vector<4x32xf32>
    %c6_157 = arith.constant 6 : index
    %c0_158 = arith.constant 0 : index
    %286 = tpu.strided_load %arg6[%c6_157, %c0_158] {strides = array<i32: 8, 1>} : memref<32x32xf32, #tpu.memory_space<vmem>>, vector<4x32xf32>
    %c7_159 = arith.constant 7 : index
    %c0_160 = arith.constant 0 : index
    %287 = tpu.strided_load %arg6[%c7_159, %c0_160] {strides = array<i32: 8, 1>} : memref<32x32xf32, #tpu.memory_space<vmem>>, vector<4x32xf32>
    %288 = tpu.concatenate %280, %281, %282, %283, %284, %285, %286, %287 in 1 : vector<4x32xf32>, vector<4x32xf32>, vector<4x32xf32>, vector<4x32xf32>, vector<4x32xf32>, vector<4x32xf32>, vector<4x32xf32>, vector<4x32xf32> -> vector<4x256xf32>
    %289 = arith.truncf %288 : vector<4x256xf32> to vector<4x256xbf16>
    %cst_161 = arith.constant dense<0.000000e+00> : vector<4x32xf32>
    %290 = tpu.matmul %289, %2, %cst_161 {dimension_numbers = #tpu.dot_dimension_numbers<[1], [0], [0], [1], [0, 0, 1, 1], [], []>} : vector<4x256xbf16>, vector<256x32xbf16>, vector<4x32xf32> -> vector<4x32xf32>
    %291 = vector.broadcast %5 : vector<1x32xf32> to vector<4x32xf32>
    %292 = arith.addf %290, %291 : vector<4x32xf32>
    %cst_162 = arith.constant 1.000000e+00 : f32
    %293 = vector.broadcast %cst_162 : f32 to vector<4x32xf32>
    %294 = arith.cmpf ogt, %224, %293 : vector<4x32xf32>
    %295 = arith.extui %294 : vector<4x32xi1> to vector<4x32xi32>
    %296 = arith.sitofp %295 : vector<4x32xi32> to vector<4x32xf32>
    %cst_163 = arith.constant 0.899999976 : f32
    %297 = vector.broadcast %cst_163 : f32 to vector<4x32xf32>
    %298 = arith.mulf %297, %224 : vector<4x32xf32>
    %299 = arith.addf %298, %292 : vector<4x32xf32>
    %cst_164 = arith.constant 1.000000e+00 : f32
    %300 = vector.broadcast %cst_164 : f32 to vector<4x32xf32>
    %301 = arith.mulf %296, %300 : vector<4x32xf32>
    %302 = arith.subf %299, %301 : vector<4x32xf32>
    %cst_165 = arith.constant 1.000000e+00 : f32
    %303 = vector.broadcast %cst_165 : f32 to vector<4x32xf32>
    %304 = arith.cmpf ogt, %302, %303 : vector<4x32xf32>
    %305 = arith.extui %304 : vector<4x32xi1> to vector<4x32xi32>
    %306 = arith.sitofp %305 : vector<4x32xi32> to vector<4x32xf32>
    %307 = arith.addf %229, %306 : vector<4x32xf32>
    %308 = vector.broadcast %6 : vector<1x32xf32> to vector<4x32xf32>
    %309 = arith.mulf %307, %308 : vector<4x32xf32>
    %cst_166 = arith.constant dense<0.000000e+00> : vector<4xf32>
    %310 = vector.multi_reduction <add>, %309, %cst_166 [1] : vector<4x32xf32> to vector<4xf32>
    %311 = vector.shape_cast %310 : vector<4xf32> to vector<4x1xf32>
    %cst_167 = arith.constant 3.000000e+00 : f32
    %312 = vector.broadcast %cst_167 : f32 to vector<1x1xf32>
    %313 = arith.mulf %312, %7 : vector<1x1xf32>
    %314 = vector.broadcast %313 : vector<1x1xf32> to vector<4x1xf32>
    %315 = arith.addf %311, %314 : vector<4x1xf32>
    %c0_168 = arith.constant 0 : index
    %c0_169 = arith.constant 0 : index
    %316 = vector.load %arg4[%c0_168, %c0_169] : memref<4x1xf32, #tpu.memory_space<vmem>>, vector<4x1xf32>
    tpu.vector_store %arg4[%c0_168, %c0_169], %315 {strides = array<i32>} : memref<4x1xf32, #tpu.memory_space<vmem>>, vector<4x1xf32>,
    return
  }
  func.func @transform_0(%arg0: i32) -> (i32, i32, i32) {
    %c0_i32 = arith.constant 0 : i32
    %c0_i32_0 = arith.constant 0 : i32
    %c0_i32_1 = arith.constant 0 : i32
    %c0_i32_2 = arith.constant 0 : i32
    return %c0_i32, %c0_i32_0, %c0_i32_1 : i32, i32, i32
  }
  func.func @transform_1(%arg0: i32) -> (i32, i32) {
    %c0_i32 = arith.constant 0 : i32
    %c0_i32_0 = arith.constant 0 : i32
    %c0_i32_1 = arith.constant 0 : i32
    return %c0_i32, %c0_i32_0 : i32, i32
  }
  func.func @transform_2(%arg0: i32) -> (i32, i32) {
    %c0_i32 = arith.constant 0 : i32
    %c0_i32_0 = arith.constant 0 : i32
    %c0_i32_1 = arith.constant 0 : i32
    return %c0_i32, %c0_i32_0 : i32, i32
  }
  func.func @transform_3(%arg0: i32) -> (i32, i32) {
    %c0_i32 = arith.constant 0 : i32
    %c0_i32_0 = arith.constant 0 : i32
    %c0_i32_1 = arith.constant 0 : i32
    return %c0_i32, %c0_i32_0 : i32, i32
  }
}

</mosaic_0001>

<llo_original>
// kernel: tpu_custom_call.1
$region0: #{tpu_custom_call.1}
  #allocation0 [shape = 'u32[]', space=smem, size = 0x4, offset = 0x4, fixed_abs, tag = 'smem constant byte address 0x4 - core index']
  #allocation1 [shape = 'u32[144,128]{1,0:T(1,128)}', space=vmem, size = 0x12000, scoped, tag = 'internal scratch']
  #allocation2 [shape = 'f32[64,32]{1,0:T(8,128)}', space=vmem, size = 0x8000, scoped, tag = 'scratch operand']
  #allocation3 [shape = 'f32[32,32]{1,0:T(8,128)}', space=vmem, size = 0x4000, scoped, tag = 'scratch operand']
  %s0 = inlined_call_operand.vmem [shape: bf16[2,64,8], index: 0, kind: input, shape index: {}]
  %s1 = inlined_call_operand.vmem [shape: bf16[344,32], index: 1, kind: input, shape index: {}]
  %s2 = inlined_call_operand.vmem [shape: f32[8,32], index: 2, kind: input, shape index: {}]
  %s3 = inlined_call_operand.vmem [shape: f32[4,1], index: 3, kind: output, shape index: {}]
  %s4 = sld [smem:[#allocation0]]
  $region22: #{tpu_custom_call.1} parent=0
    _
  %s6 = ssub.s32 1, %s4
  %s7 = scalar_select 0, %s6, %s4
  // Predicated region
  $region2: #{tpu_custom_call.1} parent=0 // pred_check
    _
  $region3: #{tpu_custom_call.1} parent=0 // pred_check_branch
    %9 = sbr.rel (0) target = $region5
  $region4: #{tpu_custom_call.1} parent=0 // pred_region
    _
  $region5: #{tpu_custom_call.1} parent=0 // pred_fallthru
    _
  // Predicated region
  $region6: #{tpu_custom_call.1} parent=0 // pred_check
    _
  $region7: #{tpu_custom_call.1} parent=0 // pred_check_branch
    %11 = sbr.rel (0) target = $region9
  $region8: #{tpu_custom_call.1} parent=0 // pred_region
    _
  $region9: #{tpu_custom_call.1} parent=0 // pred_fallthru
    _
  // Predicated region
  $region10: #{tpu_custom_call.1} parent=0 // pred_check
    _
  $region11: #{tpu_custom_call.1} parent=0 // pred_check_branch
    %13 = sbr.rel (0) target = $region13
  $region12: #{tpu_custom_call.1} parent=0 // pred_region
    _
  $region13: #{tpu_custom_call.1} parent=0 // pred_fallthru
    _
  %v15 = vld [vmem:[%s1] sm:$0xf]
  %v16 = vld [vmem:[%s1 + $0x4] sm:$0xf]
  %v17 = vld [vmem:[%s1 + $0x8] sm:$0xf]
  %v18 = vld [vmem:[%s1 + $0xc] sm:$0xf]
  %v19 = vld [vmem:[%s1 + $0x10] sm:$0xf]
  %v20 = vld [vmem:[%s1 + $0x14] sm:$0xf]
  %v21 = vld [vmem:[%s1 + $0x18] sm:$0xf]
  %v22 = vld [vmem:[%s1 + $0x1c] sm:$0xf]
  %v23 = vld [vmem:[%s1 + $0x20] sm:$0xf]
  %v24 = vld [vmem:[%s1 + $0x24] sm:$0xf]
  %v25 = vld [vmem:[%s1 + $0x28] sm:$0xf]
  %v26 = vld [vmem:[%s1 + $0x2c] sm:$0xf]
  %v27 = vld [vmem:[%s1 + $0x30] sm:$0xf]
  %v28 = vld [vmem:[%s1 + $0x34] sm:$0xf]
  %v29 = vld [vmem:[%s1 + $0x38] sm:$0xf]
  %v30 = vld [vmem:[%s1 + $0x3c] sm:$0xf]
  %v31 = vld [vmem:[%s1 + $0x40] sm:$0xf]
  %v32 = vld [vmem:[%s1 + $0x44] sm:$0xf]
  %v33 = vld [vmem:[%s1 + $0x48] sm:$0xf]
  %v34 = vld [vmem:[%s1 + $0x4c] sm:$0xf]
  %v35 = vld [vmem:[%s1 + $0x50] sm:$0xf]
  %v36 = vld [vmem:[%s1 + $0x54] sm:$0xf]
  %v37 = vld [vmem:[%s1 + $0x58] sm:$0xf]
  %v38 = vld [vmem:[%s1 + $0x5c] sm:$0xf]
  %v39 = vld [vmem:[%s1 + $0x60] sm:$0xf]
  %v40 = vld [vmem:[%s1 + $0x64] sm:$0xf]
  %v41 = vld [vmem:[%s1 + $0x68] sm:$0xf]
  %v42 = vld [vmem:[%s1 + $0x6c] sm:$0xf]
  %v43 = vld [vmem:[%s1 + $0x70] sm:$0xf]
  %v44 = vld [vmem:[%s1 + $0x74] sm:$0xf]
  %v45 = vld [vmem:[%s1 + $0x78] sm:$0xf]
  %v46 = vld [vmem:[%s1 + $0x7c] sm:$0xf]
  %v47 = vld [vmem:[%s1 + $0x80] sm:$0xf]
  %v48 = vld [vmem:[%s1 + $0x84] sm:$0xf]
  %v49 = vld [vmem:[%s1 + $0x88] sm:$0xf]
  %v50 = vld [vmem:[%s1 + $0x8c] sm:$0xf]
  %v51 = vld [vmem:[%s1 + $0x90] sm:$0xf]
  %v52 = vld [vmem:[%s1 + $0x94] sm:$0xf]
  %v53 = vld [vmem:[%s1 + $0x98] sm:$0xf]
  %v54 = vld [vmem:[%s1 + $0x9c] sm:$0xf]
  %v55 = vld [vmem:[%s1 + $0xa0] sm:$0xf]
  %v56 = vld [vmem:[%s1 + $0xa4] sm:$0xf]
  %v57 = vld [vmem:[%s1 + $0xa8] sm:$0xf]
  %v58 = vld [vmem:[%s2] sm:$0x1]
  %v59 = vld [vmem:[%s2 + $0x1] sm:$0x1]
  %v60 = vld [vmem:[%s2 + $0x2] sm:$0x1]
  %v61 = vld [vmem:[%s2 + $0x3] sm:$0x1]
  %v62 = vld [vmem:[%s2 + $0x4] sm:$0x1]
  %v63 = vld [vmem:[%s0] sm:$0xf]
  %v64 = vld [vmem:[%s0 + $0x4] sm:$0xf]
  %v65 = vld [vmem:[%s0 + $0x8] sm:$0xf]
  %v66 = vld [vmem:[%s0 + $0xc] sm:$0xf]
  %v67 = vld [vmem:[%s0 + $0x10] sm:$0xf]
  %v68 = vld [vmem:[%s0 + $0x14] sm:$0xf]
  %v69 = vld [vmem:[%s0 + $0x18] sm:$0xf]
  %v70 = vld [vmem:[%s0 + $0x1c] sm:$0xf]
  %v79 = vunpack.c.l.b16 %v63
  %v80 = vunpack.c.l.b16 %v64
  %v81 = vunpack.c.l.b16 %v65
  %v82 = vunpack.c.l.b16 %v66
  %v83 = vunpack.c.l.b16 %v67
  %v84 = vunpack.c.l.b16 %v68
  %v85 = vunpack.c.l.b16 %v69
  %v86 = vunpack.c.l.b16 %v70
  %v87 = vpack.c.b16 %v80, %v79
  %v88 = vpack.c.b16 %v82, %v81
  %v89 = vpack.c.b16 %v84, %v83
  %v90 = vpack.c.b16 %v86, %v85
  %vm91 = vcmask 64512
  %v93 = vsel %vm91, %v87, 0
  %v96 = vsel %vm91, %v88, 0
  %v99 = vsel %vm91, %v89, 0
  %v102 = vsel %vm91, %v90, 0
  %vm104 = vcmask 1043456
  %v106 = vsel %vm104, %v15, 0
  %108 = vmatprep.subr.bf16.mxu0 0
  %109 = vmatpush1.bf16.msra.mxu0 %v106
  %110 = vmatprep.subr.bf16.mxu0 0
  %111 = vmatpush1.bf16.msra.mxu0 0
  %112 = vmatprep.subr.bf16.mxu0 0
  %113 = vmatpush1.bf16.msra.mxu0 0
  %114 = vmatprep.subr.bf16.mxu0 0
  %115 = vmatpush1.bf16.msra.mxu0 0
  %116 = vmatprep.subr.bf16.mxu0 0
  %117 = vmatpush1.bf16.msra.mxu0 0
  %118 = vmatprep.subr.bf16.mxu0 0
  %119 = vmatpush1.bf16.msra.mxu0 0
  %120 = vmatprep.subr.bf16.mxu0 0
  %121 = vmatpush1.bf16.msra.mxu0 0
  %122 = vmatprep.subr.bf16.mxu0 0
  %123 = vmatpush1.bf16.msra.mxu0 0
  %124 = vmatprep.subr.bf16.mxu0 0
  %125 = vmatpush1.bf16.msra.mxu0 0
  %126 = vmatprep.subr.bf16.mxu0 0
  %127 = vmatpush1.bf16.msra.mxu0 0
  %128 = vmatprep.subr.bf16.mxu0 0
  %129 = vmatpush1.bf16.msra.mxu0 0
  %130 = vmatprep.subr.bf16.mxu0 0
  %131 = vmatpush1.bf16.msra.mxu0 0
  %132 = vmatprep.subr.bf16.mxu0 0
  %133 = vmatpush1.bf16.msra.mxu0 0
  %134 = vmatprep.subr.bf16.mxu0 0
  %135 = vmatpush1.bf16.msra.mxu0 0
  %136 = vmatprep.subr.bf16.mxu0 0
  %137 = vmatpush1.bf16.msra.mxu0 0
  %138 = vmatprep.subr.bf16.mxu0 0
  %139 = vmatpush1.bf16.msra.mxu0 0
  %140 = vmatprep.mubr.bf16.mxu0 0
  %141 = vmatmul.mubr.bf16.gmra.mrb[0].mxu0 %v93
  %v142 = vpop.f32.mrb[0].mxu0
  %v143 = vadd.f32 0.0, %v142
  %v144 = vpop.f32.mrb[0].mxu0
  %v145 = vpop.f32.mrb[0].mxu0
  %v146 = vadd.f32 0.0, %v145
  %v147 = vpop.f32.mrb[0].mxu0
  %148 = vmatprep.mubr.bf16.mxu0 0
  %149 = vmatmul.mubr.bf16.gmra.mrb[0].mxu0 %v96
  %v150 = vpop.f32.mrb[0].mxu0
  %v151 = vadd.f32 0.0, %v150
  %v152 = vpop.f32.mrb[0].mxu0
  %v153 = vpop.f32.mrb[0].mxu0
  %v154 = vadd.f32 0.0, %v153
  %v155 = vpop.f32.mrb[0].mxu0
  %156 = vmatprep.mubr.bf16.mxu0 0
  %157 = vmatmul.mubr.bf16.gmra.mrb[0].mxu0 %v99
  %v158 = vpop.f32.mrb[0].mxu0
  %v159 = vadd.f32 0.0, %v158
  %v160 = vpop.f32.mrb[0].mxu0
  %v161 = vpop.f32.mrb[0].mxu0
  %v162 = vadd.f32 0.0, %v161
  %v163 = vpop.f32.mrb[0].mxu0
  %164 = vmatprep.mubr.bf16.mxu0 0
  %165 = vmatmul.mubr.bf16.gmra.mrb[0].mxu0 %v102
  %v166 = vpop.f32.mrb[0].mxu0
  %v167 = vadd.f32 0.0, %v166
  %v168 = vpop.f32.mrb[0].mxu0
  %v169 = vpop.f32.mrb[0].mxu0
  %v170 = vadd.f32 0.0, %v169
  %v171 = vpop.f32.mrb[0].mxu0
  %172 = vdwg.mxu0
  %s173 = scalar_lea.vmem %s0, 32
  %v174 = vld [vmem:[%s173] sm:$0xf]
  %v175 = vld [vmem:[%s173 + $0x4] sm:$0xf]
  %v176 = vld [vmem:[%s173 + $0x8] sm:$0xf]
  %v177 = vld [vmem:[%s173 + $0xc] sm:$0xf]
  %v178 = vld [vmem:[%s173 + $0x10] sm:$0xf]
  %v179 = vld [vmem:[%s173 + $0x14] sm:$0xf]
  %v180 = vld [vmem:[%s173 + $0x18] sm:$0xf]
  %v181 = vld [vmem:[%s173 + $0x1c] sm:$0xf]
  %v190 = vunpack.c.l.b16 %v174
  %v191 = vunpack.c.l.b16 %v175
  %v192 = vunpack.c.l.b16 %v176
  %v193 = vunpack.c.l.b16 %v177
  %v194 = vunpack.c.l.b16 %v178
  %v195 = vunpack.c.l.b16 %v179
  %v196 = vunpack.c.l.b16 %v180
  %v197 = vunpack.c.l.b16 %v181
  %v198 = vpack.c.b16 %v191, %v190
  %v199 = vpack.c.b16 %v193, %v192
  %v200 = vpack.c.b16 %v195, %v194
  %v201 = vpack.c.b16 %v197, %v196
  %v203 = vsel %vm91, %v198, 0
  %v206 = vsel %vm91, %v199, 0
  %v209 = vsel %vm91, %v200, 0
  %v212 = vsel %vm91, %v201, 0
  %214 = vmatprep.subr.bf16.mxu0 0
  %215 = vmatpush1.bf16.msra.mxu0 %v106
  %216 = vmatprep.subr.bf16.mxu0 0
  %217 = vmatpush1.bf16.msra.mxu0 0
  %218 = vmatprep.subr.bf16.mxu0 0
  %219 = vmatpush1.bf16.msra.mxu0 0
  %220 = vmatprep.subr.bf16.mxu0 0
  %221 = vmatpush1.bf16.msra.mxu0 0
  %222 = vmatprep.subr.bf16.mxu0 0
  %223 = vmatpush1.bf16.msra.mxu0 0
  %224 = vmatprep.subr.bf16.mxu0 0
  %225 = vmatpush1.bf16.msra.mxu0 0
  %226 = vmatprep.subr.bf16.mxu0 0
  %227 = vmatpush1.bf16.msra.mxu0 0
  %228 = vmatprep.subr.bf16.mxu0 0
  %229 = vmatpush1.bf16.msra.mxu0 0
  %230 = vmatprep.subr.bf16.mxu0 0
  %231 = vmatpush1.bf16.msra.mxu0 0
  %232 = vmatprep.subr.bf16.mxu0 0
  %233 = vmatpush1.bf16.msra.mxu0 0
  %234 = vmatprep.subr.bf16.mxu0 0
  %235 = vmatpush1.bf16.msra.mxu0 0
  %236 = vmatprep.subr.bf16.mxu0 0
  %237 = vmatpush1.bf16.msra.mxu0 0
  %238 = vmatprep.subr.bf16.mxu0 0
  %239 = vmatpush1.bf16.msra.mxu0 0
  %240 = vmatprep.subr.bf16.mxu0 0
  %241 = vmatpush1.bf16.msra.mxu0 0
  %242 = vmatprep.subr.bf16.mxu0 0
  %243 = vmatpush1.bf16.msra.mxu0 0
  %244 = vmatprep.subr.bf16.mxu0 0
  %245 = vmatpush1.bf16.msra.mxu0 0
  %246 = vmatprep.mubr.bf16.mxu0 0
  %247 = vmatmul.mubr.bf16.gmra.mrb[0].mxu0 %v203
  %v248 = vpop.f32.mrb[0].mxu0
  %v249 = vadd.f32 0.0, %v248
  %v250 = vpop.f32.mrb[0].mxu0
  %v251 = vpop.f32.mrb[0].mxu0
  %v252 = vadd.f32 0.0, %v251
  %v253 = vpop.f32.mrb[0].mxu0
  %254 = vmatprep.mubr.bf16.mxu0 0
  %255 = vmatmul.mubr.bf16.gmra.mrb[0].mxu0 %v206
  %v256 = vpop.f32.mrb[0].mxu0
  %v257 = vadd.f32 0.0, %v256
  %v258 = vpop.f32.mrb[0].mxu0
  %v259 = vpop.f32.mrb[0].mxu0
  %v260 = vadd.f32 0.0, %v259
  %v261 = vpop.f32.mrb[0].mxu0
  %262 = vmatprep.mubr.bf16.mxu0 0
  %263 = vmatmul.mubr.bf16.gmra.mrb[0].mxu0 %v209
  %v264 = vpop.f32.mrb[0].mxu0
  %v265 = vadd.f32 0.0, %v264
  %v266 = vpop.f32.mrb[0].mxu0
  %v267 = vpop.f32.mrb[0].mxu0
  %v268 = vadd.f32 0.0, %v267
  %v269 = vpop.f32.mrb[0].mxu0
  %270 = vmatprep.mubr.bf16.mxu0 0
  %271 = vmatmul.mubr.bf16.gmra.mrb[0].mxu0 %v212
  %v272 = vpop.f32.mrb[0].mxu0
  %v273 = vadd.f32 0.0, %v272
  %v274 = vpop.f32.mrb[0].mxu0
  %v275 = vpop.f32.mrb[0].mxu0
  %v276 = vadd.f32 0.0, %v275
  %v277 = vpop.f32.mrb[0].mxu0
  %278 = vdwg.mxu0
  %v279 = vmax.f32 %v143, %v249
  %v280 = vmax.f32 %v146, %v252
  %v281 = vmax.f32 %v151, %v257
  %v282 = vmax.f32 %v154, %v260
  %v283 = vmax.f32 %v159, %v265
  %v284 = vmax.f32 %v162, %v268
  %v285 = vmax.f32 %v167, %v273
  %v286 = vmax.f32 %v170, %v276
  %v287 = vlaneseq
  %v288 = vshrl.u32 %v287, 7
  %v289 = vsub.s32 0, %v288
  %v290 = vrot.slane %v58, %v289
  %v291 = vadd.f32 %v279, %v290
  %v292 = vadd.f32 %v280, %v290
  %v293 = vadd.f32 %v281, %v290
  %v294 = vadd.f32 %v282, %v290
  %v295 = vadd.f32 %v283, %v290
  %v296 = vadd.f32 %v284, %v290
  %v297 = vadd.f32 %v285, %v290
  %v298 = vadd.f32 %v286, %v290
  %v299 = vlaneseq
  %v300 = vshrl.u32 %v299, 7
  %v301 = vadd.s32 %v300, 8
  %v302 = vadd.s32 %v300, 16
  %v303 = vadd.s32 %v300, 24
  %v304 = vadd.s32 %v300, 32
  %v305 = vadd.s32 %v300, 40
  %v306 = vadd.s32 %v300, 48
  %v307 = vadd.s32 %v300, 56
  %vm308 = vcmp.lt.s32.totalorder %v300, 0
  %v309 = vsub.s32 0, %v300
  %v310 = vsel %vm308, %v309, %v300
  %v311 = vshrl.u32 %v310, 4
  %v312 = vand.u32 %v310, 15
  %v313 = vsub.s32 0, %v312
  %v314 = vsel %vm308, %v313, %v312
  %vm315 = vcmp.lt.s32.totalorder %v301, 0
  %v316 = vsub.s32 0, %v301
  %v317 = vsel %vm315, %v316, %v301
  %v318 = vshrl.u32 %v317, 4
  %v319 = vand.u32 %v317, 15
  %v320 = vsub.s32 0, %v319
  %v321 = vsel %vm315, %v320, %v319
  %vm322 = vcmp.lt.s32.totalorder %v302, 0
  %v323 = vsub.s32 0, %v302
  %v324 = vsel %vm322, %v323, %v302
  %v325 = vshrl.u32 %v324, 4
  %v326 = vand.u32 %v324, 15
  %v327 = vsub.s32 0, %v326
  %v328 = vsel %vm322, %v327, %v326
  %vm329 = vcmp.lt.s32.totalorder %v303, 0
  %v330 = vsub.s32 0, %v303
  %v331 = vsel %vm329, %v330, %v303
  %v332 = vshrl.u32 %v331, 4
  %v333 = vand.u32 %v331, 15
  %v334 = vsub.s32 0, %v333
  %v335 = vsel %vm329, %v334, %v333
  %vm336 = vcmp.lt.s32.totalorder %v304, 0
  %v337 = vsub.s32 0, %v304
  %v338 = vsel %vm336, %v337, %v304
  %v339 = vshrl.u32 %v338, 4
  %v340 = vand.u32 %v338, 15
  %v341 = vsub.s32 0, %v340
  %v342 = vsel %vm336, %v341, %v340
  %vm343 = vcmp.lt.s32.totalorder %v305, 0
  %v344 = vsub.s32 0, %v305
  %v345 = vsel %vm343, %v344, %v305
  %v346 = vshrl.u32 %v345, 4
  %v347 = vand.u32 %v345, 15
  %v348 = vsub.s32 0, %v347
  %v349 = vsel %vm343, %v348, %v347
  %vm350 = vcmp.lt.s32.totalorder %v306, 0
  %v351 = vsub.s32 0, %v306
  %v352 = vsel %vm350, %v351, %v306
  %v353 = vshrl.u32 %v352, 4
  %v354 = vand.u32 %v352, 15
  %v355 = vsub.s32 0, %v354
  %v356 = vsel %vm350, %v355, %v354
  %vm357 = vcmp.lt.s32.totalorder %v307, 0
  %v358 = vsub.s32 0, %v307
  %v359 = vsel %vm357, %v358, %v307
  %v360 = vshrl.u32 %v359, 4
  %v361 = vand.u32 %v359, 15
  %v362 = vsub.s32 0, %v361
  %v363 = vsel %vm357, %v362, %v361
  %vm364 = vcmp.ne.s32.totalorder %v314, 0
  %vm365 = vcmp.ne.s32.totalorder %v321, 0
  %vm366 = vcmp.ne.s32.totalorder %v328, 0
  %vm367 = vcmp.ne.s32.totalorder %v335, 0
  %vm368 = vcmp.ne.s32.totalorder %v342, 0
  %vm369 = vcmp.ne.s32.totalorder %v349, 0
  %vm370 = vcmp.ne.s32.totalorder %v356, 0
  %vm371 = vcmp.ne.s32.totalorder %v363, 0
  %vm372 = vcmp.lt.s32.totalorder %v314, 0
  %vm373 = vcmp.lt.s32.totalorder %v321, 0
  %vm374 = vcmp.lt.s32.totalorder %v328, 0
  %vm375 = vcmp.lt.s32.totalorder %v335, 0
  %vm376 = vcmp.lt.s32.totalorder %v342, 0
  %vm377 = vcmp.lt.s32.totalorder %v349, 0
  %vm378 = vcmp.lt.s32.totalorder %v356, 0
  %vm379 = vcmp.lt.s32.totalorder %v363, 0
  %vm380 = vmand %vm372, %vm364
  %vm381 = vmand %vm373, %vm365
  %vm382 = vmand %vm374, %vm366
  %vm383 = vmand %vm375, %vm367
  %vm384 = vmand %vm376, %vm368
  %vm385 = vmand %vm377, %vm369
  %vm386 = vmand %vm378, %vm370
  %vm387 = vmand %vm379, %vm371
  %v388 = vadd.s32 %v314, 16
  %v389 = vadd.s32 %v321, 16
  %v390 = vadd.s32 %v328, 16
  %v391 = vadd.s32 %v335, 16
  %v392 = vadd.s32 %v342, 16
  %v393 = vadd.s32 %v349, 16
  %v394 = vadd.s32 %v356, 16
  %v395 = vadd.s32 %v363, 16
  %v396 = vsel %vm380, %v388, %v314
  %v397 = vsel %vm381, %v389, %v321
  %v398 = vsel %vm382, %v390, %v328
  %v399 = vsel %vm383, %v391, %v335
  %v400 = vsel %vm384, %v392, %v342
  %v401 = vsel %vm385, %v393, %v349
  %v402 = vsel %vm386, %v394, %v356
  %v403 = vsel %vm387, %v395, %v363
  %v404 = vadd.s32 %v396, 4294967294
  %v405 = vadd.s32 %v397, 4294967294
  %v406 = vadd.s32 %v398, 4294967294
  %v407 = vadd.s32 %v399, 4294967294
  %v408 = vadd.s32 %v400, 4294967294
  %v409 = vadd.s32 %v401, 4294967294
  %v410 = vadd.s32 %v402, 4294967294
  %v411 = vadd.s32 %v403, 4294967294
  %vm412 = vcmp.ge.s32.totalorder %v404, 0
  %vm413 = vcmp.ge.s32.totalorder %v405, 0
  %vm414 = vcmp.ge.s32.totalorder %v406, 0
  %vm415 = vcmp.ge.s32.totalorder %v407, 0
  %vm416 = vcmp.ge.s32.totalorder %v408, 0
  %vm417 = vcmp.ge.s32.totalorder %v409, 0
  %vm418 = vcmp.ge.s32.totalorder %v410, 0
  %vm419 = vcmp.ge.s32.totalorder %v411, 0
  %vm420 = vcmp.lt.s32.totalorder %v404, 16
  %vm421 = vcmp.lt.s32.totalorder %v405, 16
  %vm422 = vcmp.lt.s32.totalorder %v406, 16
  %vm423 = vcmp.lt.s32.totalorder %v407, 16
  %vm424 = vcmp.lt.s32.totalorder %v408, 16
  %vm425 = vcmp.lt.s32.totalorder %v409, 16
  %vm426 = vcmp.lt.s32.totalorder %v410, 16
  %vm427 = vcmp.lt.s32.totalorder %v411, 16
  %vm428 = vmand %vm412, %vm420
  %vm429 = vmand %vm413, %vm421
  %vm430 = vmand %vm414, %vm422
  %vm431 = vmand %vm415, %vm423
  %vm432 = vmand %vm416, %vm424
  %vm433 = vmand %vm417, %vm425
  %vm434 = vmand %vm418, %vm426
  %vm435 = vmand %vm419, %vm427
  %v436 = vadd.s32 %v396, 4294967295
  %v437 = vadd.s32 %v397, 4294967295
  %v438 = vadd.s32 %v398, 4294967295
  %v439 = vadd.s32 %v399, 4294967295
  %v440 = vadd.s32 %v400, 4294967295
  %v441 = vadd.s32 %v401, 4294967295
  %v442 = vadd.s32 %v402, 4294967295
  %v443 = vadd.s32 %v403, 4294967295
  %vm444 = vcmp.ge.s32.totalorder %v436, 0
  %vm445 = vcmp.ge.s32.totalorder %v437, 0
  %vm446 = vcmp.ge.s32.totalorder %v438, 0
  %vm447 = vcmp.ge.s32.totalorder %v439, 0
  %vm448 = vcmp.ge.s32.totalorder %v440, 0
  %vm449 = vcmp.ge.s32.totalorder %v441, 0
  %vm450 = vcmp.ge.s32.totalorder %v442, 0
  %vm451 = vcmp.ge.s32.totalorder %v443, 0
  %vm452 = vcmp.lt.s32.totalorder %v436, 16
  %vm453 = vcmp.lt.s32.totalorder %v437, 16
  %vm454 = vcmp.lt.s32.totalorder %v438, 16
  %vm455 = vcmp.lt.s32.totalorder %v439, 16
  %vm456 = vcmp.lt.s32.totalorder %v440, 16
  %vm457 = vcmp.lt.s32.totalorder %v441, 16
  %vm458 = vcmp.lt.s32.totalorder %v442, 16
  %vm459 = vcmp.lt.s32.totalorder %v443, 16
  %vm460 = vmand %vm444, %vm452
  %vm461 = vmand %vm445, %vm453
  %vm462 = vmand %vm446, %vm454
  %vm463 = vmand %vm447, %vm455
  %vm464 = vmand %vm448, %vm456
  %vm465 = vmand %vm449, %vm457
  %vm466 = vmand %vm450, %vm458
  %vm467 = vmand %vm451, %vm459
  %v468 = vadd.s32 %v396, 1
  %v469 = vadd.s32 %v397, 1
  %v470 = vadd.s32 %v398, 1
  %v471 = vadd.s32 %v399, 1
  %v472 = vadd.s32 %v400, 1
  %v473 = vadd.s32 %v401, 1
  %v474 = vadd.s32 %v402, 1
  %v475 = vadd.s32 %v403, 1
  %vm476 = vcmp.ge.s32.totalorder %v468, 0
  %vm477 = vcmp.ge.s32.totalorder %v469, 0
  %vm478 = vcmp.ge.s32.totalorder %v470, 0
  %vm479 = vcmp.ge.s32.totalorder %v471, 0
  %vm480 = vcmp.ge.s32.totalorder %v472, 0
  %vm481 = vcmp.ge.s32.totalorder %v473, 0
  %vm482 = vcmp.ge.s32.totalorder %v474, 0
  %vm483 = vcmp.ge.s32.totalorder %v475, 0
  %vm484 = vcmp.lt.s32.totalorder %v468, 16
  %vm485 = vcmp.lt.s32.totalorder %v469, 16
  %vm486 = vcmp.lt.s32.totalorder %v470, 16
  %vm487 = vcmp.lt.s32.totalorder %v471, 16
  %vm488 = vcmp.lt.s32.totalorder %v472, 16
  %vm489 = vcmp.lt.s32.totalorder %v473, 16
  %vm490 = vcmp.lt.s32.totalorder %v474, 16
  %vm491 = vcmp.lt.s32.totalorder %v475, 16
  %vm492 = vmand %vm476, %vm484
  %vm493 = vmand %vm477, %vm485
  %vm494 = vmand %vm478, %vm486
  %vm495 = vmand %vm479, %vm487
  %vm496 = vmand %vm480, %vm488
  %vm497 = vmand %vm481, %vm489
  %vm498 = vmand %vm482, %vm490
  %vm499 = vmand %vm483, %vm491
  %v500 = vadd.s32 %v396, 2
  %v501 = vadd.s32 %v397, 2
  %v502 = vadd.s32 %v398, 2
  %v503 = vadd.s32 %v399, 2
  %v504 = vadd.s32 %v400, 2
  %v505 = vadd.s32 %v401, 2
  %v506 = vadd.s32 %v402, 2
  %v507 = vadd.s32 %v403, 2
  %vm508 = vcmp.ge.s32.totalorder %v500, 0
  %vm509 = vcmp.ge.s32.totalorder %v501, 0
  %vm510 = vcmp.ge.s32.totalorder %v502, 0
  %vm511 = vcmp.ge.s32.totalorder %v503, 0
  %vm512 = vcmp.ge.s32.totalorder %v504, 0
  %vm513 = vcmp.ge.s32.totalorder %v505, 0
  %vm514 = vcmp.ge.s32.totalorder %v506, 0
  %vm515 = vcmp.ge.s32.totalorder %v507, 0
  %vm516 = vcmp.lt.s32.totalorder %v500, 16
  %vm517 = vcmp.lt.s32.totalorder %v501, 16
  %vm518 = vcmp.lt.s32.totalorder %v502, 16
  %vm519 = vcmp.lt.s32.totalorder %v503, 16
  %vm520 = vcmp.lt.s32.totalorder %v504, 16
  %vm521 = vcmp.lt.s32.totalorder %v505, 16
  %vm522 = vcmp.lt.s32.totalorder %v506, 16
  %vm523 = vcmp.lt.s32.totalorder %v507, 16
  %vm524 = vmand %vm508, %vm516
  %vm525 = vmand %vm509, %vm517
  %vm526 = vmand %vm510, %vm518
  %vm527 = vmand %vm511, %vm519
  %vm528 = vmand %vm512, %vm520
  %vm529 = vmand %vm513, %vm521
  %vm530 = vmand %vm514, %vm522
  %vm531 = vmand %vm515, %vm523
  %vm532 = vcmp.gt.f32.partialorder 0.0, 1.0
  %v533 = vsel %vm532, 1, 0
  %v534 = vcvt.s32.f32 %v533
  %v535 = vadd.f32 %v291, 0.0
  %v536 = vadd.f32 %v292, 0.0
  %v537 = vadd.f32 %v293, 0.0
  %v538 = vadd.f32 %v294, 0.0
  %v539 = vadd.f32 %v295, 0.0
  %v540 = vadd.f32 %v296, 0.0
  %v541 = vadd.f32 %v297, 0.0
  %v542 = vadd.f32 %v298, 0.0
  %v543 = vsub.f32 %v535, %v534
  %v544 = vsub.f32 %v536, %v534
  %v545 = vsub.f32 %v537, %v534
  %v546 = vsub.f32 %v538, %v534
  %v547 = vsub.f32 %v539, %v534
  %v548 = vsub.f32 %v540, %v534
  %v549 = vsub.f32 %v541, %v534
  %v550 = vsub.f32 %v542, %v534
  %vm551 = vcmp.gt.f32.partialorder %v543, 1.0
  %vm552 = vcmp.gt.f32.partialorder %v544, 1.0
  %vm553 = vcmp.gt.f32.partialorder %v545, 1.0
  %vm554 = vcmp.gt.f32.partialorder %v546, 1.0
  %vm555 = vcmp.gt.f32.partialorder %v547, 1.0
  %vm556 = vcmp.gt.f32.partialorder %v548, 1.0
  %vm557 = vcmp.gt.f32.partialorder %v549, 1.0
  %vm558 = vcmp.gt.f32.partialorder %v550, 1.0
  %v559 = vsel %vm551, 1, 0
  %v560 = vsel %vm552, 1, 0
  %v561 = vsel %vm553, 1, 0
  %v562 = vsel %vm554, 1, 0
  %v563 = vsel %vm555, 1, 0
  %v564 = vsel %vm556, 1, 0
  %v565 = vsel %vm557, 1, 0
  %v566 = vsel %vm558, 1, 0
  %v567 = vcvt.s32.f32 %v559
  %v568 = vcvt.s32.f32 %v560
  %v569 = vcvt.s32.f32 %v561
  %v570 = vcvt.s32.f32 %v562
  %v571 = vcvt.s32.f32 %v563
  %v572 = vcvt.s32.f32 %v564
  %v573 = vcvt.s32.f32 %v565
  %v574 = vcvt.s32.f32 %v566
  %v575 = vrot.slane %v567, 6
  %v576 = vrot.slane %v568, 6
  %v577 = vrot.slane %v569, 6
  %v578 = vrot.slane %v570, 6
  %v579 = vrot.slane %v571, 6
  %v580 = vrot.slane %v572, 6
  %v581 = vrot.slane %v573, 6
  %v582 = vrot.slane %v574, 6
  %vm583 = vcmp.lt.s32.totalorder %v300, 2
  %v584 = vsel %vm583, %v581, %v582
  %v585 = vsel %vm583, %v580, %v581
  %v586 = vsel %vm583, %v579, %v580
  %v587 = vsel %vm583, %v578, %v579
  %v588 = vsel %vm583, %v577, %v578
  %v589 = vsel %vm583, %v576, %v577
  %v590 = vsel %vm583, %v575, %v576
  %v591 = vsel %vm583, %v582, %v575
  %v592 = vsel %vm428, %v591, 0.0
  %v593 = vsel %vm429, %v590, 0.0
  %v594 = vsel %vm430, %v589, 0.0
  %v595 = vsel %vm431, %v588, 0.0
  %v596 = vsel %vm432, %v587, 0.0
  %v597 = vsel %vm433, %v586, 0.0
  %v598 = vsel %vm434, %v585, 0.0
  %v599 = vsel %vm435, %v584, 0.0
  %v600 = vrot.slane %v567, 7
  %v601 = vrot.slane %v568, 7
  %v602 = vrot.slane %v569, 7
  %v603 = vrot.slane %v570, 7
  %v604 = vrot.slane %v571, 7
  %v605 = vrot.slane %v572, 7
  %v606 = vrot.slane %v573, 7
  %v607 = vrot.slane %v574, 7
  %vm608 = vcmp.lt.s32.totalorder %v300, 1
  %v609 = vsel %vm608, %v606, %v607
  %v610 = vsel %vm608, %v605, %v606
  %v611 = vsel %vm608, %v604, %v605
  %v612 = vsel %vm608, %v603, %v604
  %v613 = vsel %vm608, %v602, %v603
  %v614 = vsel %vm608, %v601, %v602
  %v615 = vsel %vm608, %v600, %v601
  %v616 = vsel %vm608, %v607, %v600
  %v617 = vsel %vm460, %v616, 0.0
  %v618 = vsel %vm461, %v615, 0.0
  %v619 = vsel %vm462, %v614, 0.0
  %v620 = vsel %vm463, %v613, 0.0
  %v621 = vsel %vm464, %v612, 0.0
  %v622 = vsel %vm465, %v611, 0.0
  %v623 = vsel %vm466, %v610, 0.0
  %v624 = vsel %vm467, %v609, 0.0
  %v625 = vrot.slane %v567, 1
  %v626 = vrot.slane %v568, 1
  %v627 = vrot.slane %v569, 1
  %v628 = vrot.slane %v570, 1
  %v629 = vrot.slane %v571, 1
  %v630 = vrot.slane %v572, 1
  %v631 = vrot.slane %v573, 1
  %v632 = vrot.slane %v574, 1
  %vm633 = vcmp.lt.s32.totalorder %v300, 7
  %v634 = vsel %vm633, %v631, %v632
  %v635 = vsel %vm633, %v630, %v631
  %v636 = vsel %vm633, %v629, %v630
  %v637 = vsel %vm633, %v628, %v629
  %v638 = vsel %vm633, %v627, %v628
  %v639 = vsel %vm633, %v626, %v627
  %v640 = vsel %vm633, %v625, %v626
  %v641 = vsel %vm633, %v632, %v625
  %v642 = vsel %vm492, %v640, 0.0
  %v643 = vsel %vm493, %v639, 0.0
  %v644 = vsel %vm494, %v638, 0.0
  %v645 = vsel %vm495, %v637, 0.0
  %v646 = vsel %vm496, %v636, 0.0
  %v647 = vsel %vm497, %v635, 0.0
  %v648 = vsel %vm498, %v634, 0.0
  %v649 = vsel %vm499, %v641, 0.0
  %v650 = vrot.slane %v567, 2
  %v651 = vrot.slane %v568, 2
  %v652 = vrot.slane %v569, 2
  %v653 = vrot.slane %v570, 2
  %v654 = vrot.slane %v571, 2
  %v655 = vrot.slane %v572, 2
  %v656 = vrot.slane %v573, 2
  %v657 = vrot.slane %v574, 2
  %vm658 = vcmp.lt.s32.totalorder %v300, 6
  %v659 = vsel %vm658, %v656, %v657
  %v660 = vsel %vm658, %v655, %v656
  %v661 = vsel %vm658, %v654, %v655
  %v662 = vsel %vm658, %v653, %v654
  %v663 = vsel %vm658, %v652, %v653
  %v664 = vsel %vm658, %v651, %v652
  %v665 = vsel %vm658, %v650, %v651
  %v666 = vsel %vm658, %v657, %v650
  %v667 = vsel %vm524, %v665, 0.0
  %v668 = vsel %vm525, %v664, 0.0
  %v669 = vsel %vm526, %v663, 0.0
  %v670 = vsel %vm527, %v662, 0.0
  %v671 = vsel %vm528, %v661, 0.0
  %v672 = vsel %vm529, %v660, 0.0
  %v673 = vsel %vm530, %v659, 0.0
  %v674 = vsel %vm531, %v666, 0.0
  %683 = vrot.lane.b32.xlu0 %v617, 16
  %v684 = vpop.permute.xlu0 %683
  %685 = vrot.lane.b32.xlu0 %v618, 16
  %v686 = vpop.permute.xlu0 %685
  %687 = vrot.lane.b32.xlu0 %v619, 16
  %v688 = vpop.permute.xlu0 %687
  %689 = vrot.lane.b32.xlu0 %v620, 16
  %v690 = vpop.permute.xlu0 %689
  %691 = vrot.lane.b32.xlu0 %v621, 16
  %v692 = vpop.permute.xlu0 %691
  %693 = vrot.lane.b32.xlu0 %v622, 16
  %v694 = vpop.permute.xlu0 %693
  %695 = vrot.lane.b32.xlu0 %v623, 16
  %v696 = vpop.permute.xlu0 %695
  %697 = vrot.lane.b32.xlu0 %v624, 16
  %v698 = vpop.permute.xlu0 %697
  %715 = vrot.lane.b32.xlu0 %v567, 32
  %v716 = vpop.permute.xlu0 %715
  %717 = vrot.lane.b32.xlu0 %v568, 32
  %v718 = vpop.permute.xlu0 %717
  %719 = vrot.lane.b32.xlu0 %v569, 32
  %v720 = vpop.permute.xlu0 %719
  %721 = vrot.lane.b32.xlu0 %v570, 32
  %v722 = vpop.permute.xlu0 %721
  %723 = vrot.lane.b32.xlu0 %v571, 32
  %v724 = vpop.permute.xlu0 %723
  %725 = vrot.lane.b32.xlu0 %v572, 32
  %v726 = vpop.permute.xlu0 %725
  %727 = vrot.lane.b32.xlu0 %v573, 32
  %v728 = vpop.permute.xlu0 %727
  %729 = vrot.lane.b32.xlu0 %v574, 32
  %v730 = vpop.permute.xlu0 %729
  %747 = vrot.lane.b32.xlu0 %v642, 48
  %v748 = vpop.permute.xlu0 %747
  %749 = vrot.lane.b32.xlu0 %v643, 48
  %v750 = vpop.permute.xlu0 %749
  %751 = vrot.lane.b32.xlu0 %v644, 48
  %v752 = vpop.permute.xlu0 %751
  %753 = vrot.lane.b32.xlu0 %v645, 48
  %v754 = vpop.permute.xlu0 %753
  %755 = vrot.lane.b32.xlu0 %v646, 48
  %v756 = vpop.permute.xlu0 %755
  %757 = vrot.lane.b32.xlu0 %v647, 48
  %v758 = vpop.permute.xlu0 %757
  %759 = vrot.lane.b32.xlu0 %v648, 48
  %v760 = vpop.permute.xlu0 %759
  %761 = vrot.lane.b32.xlu0 %v649, 48
  %v762 = vpop.permute.xlu0 %761
  %779 = vrot.lane.b32.xlu0 %v667, 64
  %v780 = vpop.permute.xlu0 %779
  %781 = vrot.lane.b32.xlu0 %v668, 64
  %v782 = vpop.permute.xlu0 %781
  %783 = vrot.lane.b32.xlu0 %v669, 64
  %v784 = vpop.permute.xlu0 %783
  %785 = vrot.lane.b32.xlu0 %v670, 64
  %v786 = vpop.permute.xlu0 %785
  %787 = vrot.lane.b32.xlu0 %v671, 64
  %v788 = vpop.permute.xlu0 %787
  %789 = vrot.lane.b32.xlu0 %v672, 64
  %v790 = vpop.permute.xlu0 %789
  %791 = vrot.lane.b32.xlu0 %v673, 64
  %v792 = vpop.permute.xlu0 %791
  %793 = vrot.lane.b32.xlu0 %v674, 64
  %v794 = vpop.permute.xlu0 %793
  %vm803 = vcmask 130048
  %v804 = vsel %vm803, %v592, %v684
  %v805 = vsel %vm803, %v593, %v686
  %v806 = vsel %vm803, %v594, %v688
  %v807 = vsel %vm803, %v595, %v690
  %v808 = vsel %vm803, %v596, %v692
  %v809 = vsel %vm803, %v597, %v694
  %v810 = vsel %vm803, %v598, %v696
  %v811 = vsel %vm803, %v599, %v698
  %vm812 = vcmask 261120
  %v813 = vsel %vm812, %v804, %v716
  %v814 = vsel %vm812, %v805, %v718
  %v815 = vsel %vm812, %v806, %v720
  %v816 = vsel %vm812, %v807, %v722
  %v817 = vsel %vm812, %v808, %v724
  %v818 = vsel %vm812, %v809, %v726
  %v819 = vsel %vm812, %v810, %v728
  %v820 = vsel %vm812, %v811, %v730
  %vm821 = vcmask 392192
  %v822 = vsel %vm821, %v813, %v748
  %v823 = vsel %vm821, %v814, %v750
  %v824 = vsel %vm821, %v815, %v752
  %v825 = vsel %vm821, %v816, %v754
  %v826 = vsel %vm821, %v817, %v756
  %v827 = vsel %vm821, %v818, %v758
  %v828 = vsel %vm821, %v819, %v760
  %v829 = vsel %vm821, %v820, %v762
  %vm830 = vcmask 523264
  %v831 = vsel %vm830, %v822, %v780
  %v832 = vsel %vm830, %v823, %v782
  %v833 = vsel %vm830, %v824, %v784
  %v834 = vsel %vm830, %v825, %v786
  %v835 = vsel %vm830, %v826, %v788
  %v836 = vsel %vm830, %v827, %v790
  %v837 = vsel %vm830, %v828, %v792
  %v838 = vsel %vm830, %v829, %v794
  %v839 = vpack.c.bf16 %v832, %v831
  %v840 = vpack.c.bf16 %v834, %v833
  %v841 = vpack.c.bf16 %v836, %v835
  %v842 = vpack.c.bf16 %v838, %v837
  %v843 = vlaneseq
  %v844 = vshrl.u32 %v843, 7
  %v845 = vsub.s32 0, %v844
  %v846 = vrot.slane %v59, %v845
  %v857 = vunpack.c.l.b16 %v16
  %v858 = vunpack.c.l.b16 %v17
  %v859 = vunpack.c.l.b16 %v18
  %v860 = vunpack.c.l.b16 %v19
  %v861 = vunpack.c.l.b16 %v20
  %v862 = vunpack.c.l.b16 %v21
  %v863 = vunpack.c.l.b16 %v22
  %v864 = vunpack.c.l.b16 %v23
  %v865 = vunpack.c.l.b16 %v24
  %v866 = vunpack.c.l.b16 %v25
  %v867 = vpack.c.b16 %v858, %v857
  %v868 = vpack.c.b16 %v860, %v859
  %v869 = vpack.c.b16 %v862, %v861
  %v870 = vpack.c.b16 %v864, %v863
  %v871 = vpack.c.b16 %v866, %v865
  %vm877 = vcmask 654336
  %v879 = vsel %vm877, %v839, 0
  %v882 = vsel %vm877, %v840, 0
  %v885 = vsel %vm877, %v841, 0
  %v888 = vsel %vm877, %v842, 0
  %890 = vmatprep.subr.bf16.mxu0 0
  %891 = vmatpush1.bf16.msra.mxu0 %v867
  %892 = vmatprep.subr.bf16.mxu0 0
  %893 = vmatpush1.bf16.msra.mxu0 %v868
  %894 = vmatprep.subr.bf16.mxu0 0
  %895 = vmatpush1.bf16.msra.mxu0 %v869
  %896 = vmatprep.subr.bf16.mxu0 0
  %897 = vmatpush1.bf16.msra.mxu0 %v870
  %898 = vmatprep.subr.bf16.mxu0 0
  %899 = vmatpush1.bf16.msra.mxu0 %v871
  %900 = vmatprep.subr.bf16.mxu0 0
  %901 = vmatpush1.bf16.msra.mxu0 0
  %902 = vmatprep.subr.bf16.mxu0 0
  %903 = vmatpush1.bf16.msra.mxu0 0
  %904 = vmatprep.subr.bf16.mxu0 0
  %905 = vmatpush1.bf16.msra.mxu0 0
  %906 = vmatprep.subr.bf16.mxu0 0
  %907 = vmatpush1.bf16.msra.mxu0 0
  %908 = vmatprep.subr.bf16.mxu0 0
  %909 = vmatpush1.bf16.msra.mxu0 0
  %910 = vmatprep.subr.bf16.mxu0 0
  %911 = vmatpush1.bf16.msra.mxu0 0
  %912 = vmatprep.subr.bf16.mxu0 0
  %913 = vmatpush1.bf16.msra.mxu0 0
  %914 = vmatprep.subr.bf16.mxu0 0
  %915 = vmatpush1.bf16.msra.mxu0 0
  %916 = vmatprep.subr.bf16.mxu0 0
  %917 = vmatpush1.bf16.msra.mxu0 0
  %918 = vmatprep.subr.bf16.mxu0 0
  %919 = vmatpush1.bf16.msra.mxu0 0
  %920 = vmatprep.subr.bf16.mxu0 0
  %921 = vmatpush1.bf16.msra.mxu0 0
  %922 = vmatprep.mubr.bf16.mxu0 0
  %923 = vmatmul.mubr.bf16.gmra.mrb[0].mxu0 %v879
  %v924 = vpop.f32.mrb[0].mxu0
  %v925 = vadd.f32 %v846, %v924
  %v926 = vpop.f32.mrb[0].mxu0
  %v927 = vpop.f32.mrb[0].mxu0
  %v928 = vadd.f32 %v846, %v927
  %v929 = vpop.f32.mrb[0].mxu0
  %930 = vmatprep.mubr.bf16.mxu0 0
  %931 = vmatmul.mubr.bf16.gmra.mrb[0].mxu0 %v882
  %v932 = vpop.f32.mrb[0].mxu0
  %v933 = vadd.f32 %v846, %v932
  %v934 = vpop.f32.mrb[0].mxu0
  %v935 = vpop.f32.mrb[0].mxu0
  %v936 = vadd.f32 %v846, %v935
  %v937 = vpop.f32.mrb[0].mxu0
  %938 = vmatprep.mubr.bf16.mxu0 0
  %939 = vmatmul.mubr.bf16.gmra.mrb[0].mxu0 %v885
  %v940 = vpop.f32.mrb[0].mxu0
  %v941 = vadd.f32 %v846, %v940
  %v942 = vpop.f32.mrb[0].mxu0
  %v943 = vpop.f32.mrb[0].mxu0
  %v944 = vadd.f32 %v846, %v943
  %v945 = vpop.f32.mrb[0].mxu0
  %946 = vmatprep.mubr.bf16.mxu0 0
  %947 = vmatmul.mubr.bf16.gmra.mrb[0].mxu0 %v888
  %v948 = vpop.f32.mrb[0].mxu0
  %v949 = vadd.f32 %v846, %v948
  %v950 = vpop.f32.mrb[0].mxu0
  %v951 = vpop.f32.mrb[0].mxu0
  %v952 = vadd.f32 %v846, %v951
  %v953 = vpop.f32.mrb[0].mxu0
  %954 = vdwg.mxu0
  %v955 = vrot.slane %v925, 1
  %v956 = vrot.slane %v928, 1
  %v957 = vrot.slane %v933, 1
  %v958 = vrot.slane %v936, 1
  %v959 = vrot.slane %v941, 1
  %v960 = vrot.slane %v944, 1
  %v961 = vrot.slane %v949, 1
  %v962 = vrot.slane %v952, 1
  %v963 = vsel %vm633, %v961, %v962
  %v964 = vsel %vm633, %v960, %v961
  %v965 = vsel %vm633, %v959, %v960
  %v966 = vsel %vm633, %v958, %v959
  %v967 = vsel %vm633, %v957, %v958
  %v968 = vsel %vm633, %v956, %v957
  %v969 = vsel %vm633, %v955, %v956
  %v970 = vsel %vm633, %v962, %v955
  %v971 = vmax.f32 %v925, %v969
  %v972 = vmax.f32 %v928, %v968
  %v973 = vmax.f32 %v933, %v967
  %v974 = vmax.f32 %v936, %v966
  %v975 = vmax.f32 %v941, %v965
  %v976 = vmax.f32 %v944, %v964
  %v977 = vmax.f32 %v949, %v963
  %v978 = vmax.f32 %v952, %v970
  %979 = vst.msk [vmem:[#allocation2] sm:$0xff] %vm812, %v971
  %980 = vst.msk [vmem:[#allocation2 + $0x8] sm:$0xff] %vm812, %v972
  %981 = vst.msk [vmem:[#allocation2 + $0x10] sm:$0xff] %vm812, %v973
  %982 = vst.msk [vmem:[#allocation2 + $0x18] sm:$0xff] %vm812, %v974
  %983 = vst.msk [vmem:[#allocation2 + $0x20] sm:$0xff] %vm812, %v975
  %984 = vst.msk [vmem:[#allocation2 + $0x28] sm:$0xff] %vm812, %v976
  %985 = vst.msk [vmem:[#allocation2 + $0x30] sm:$0xff] %vm812, %v977
  %986 = vst.msk [vmem:[#allocation2 + $0x38] sm:$0xff] %vm812, %v978
  %v987 = vld [vmem:[#allocation2] ss:$2 sm:$0xff]
  %s988 = scalar_lea.vmem [#allocation2], 16
  %v989 = vld [vmem:[%s988] ss:$2 sm:$0xff]
  %s990 = scalar_lea.vmem [#allocation2], 32
  %v991 = vld [vmem:[%s990] ss:$2 sm:$0xff]
  %s992 = scalar_lea.vmem [#allocation2], 48
  %v993 = vld [vmem:[%s992] ss:$2 sm:$0xff]
  %v994 = vadd.f32 %v987, 0.0
  %v995 = vadd.f32 %v989, 0.0
  %v996 = vadd.f32 %v991, 0.0
  %v997 = vadd.f32 %v993, 0.0
  %v998 = vsub.f32 %v994, %v534
  %v999 = vsub.f32 %v995, %v534
  %v1000 = vsub.f32 %v996, %v534
  %v1001 = vsub.f32 %v997, %v534
  %vm1002 = vcmp.gt.f32.partialorder %v998, 1.0
  %vm1003 = vcmp.gt.f32.partialorder %v999, 1.0
  %vm1004 = vcmp.gt.f32.partialorder %v1000, 1.0
  %vm1005 = vcmp.gt.f32.partialorder %v1001, 1.0
  %v1006 = vsel %vm1002, 1, 0
  %v1007 = vsel %vm1003, 1, 0
  %v1008 = vsel %vm1004, 1, 0
  %v1009 = vsel %vm1005, 1, 0
  %v1010 = vcvt.s32.f32 %v1006
  %v1011 = vcvt.s32.f32 %v1007
  %v1012 = vcvt.s32.f32 %v1008
  %v1013 = vcvt.s32.f32 %v1009
  %1014 = vst.msk [vmem:[#allocation3] sm:$0xff] %vm812, %v1010
  %1015 = vst.msk [vmem:[#allocation3 + $0x8] sm:$0xff] %vm812, %v1011
  %1016 = vst.msk [vmem:[#allocation3 + $0x10] sm:$0xff] %vm812, %v1012
  %1017 = vst.msk [vmem:[#allocation3 + $0x18] sm:$0xff] %vm812, %v1013
  %v1018 = vld [vmem:[#allocation3] ss:$8 sm:$0xf]
  %s1019 = scalar_lea.vmem [#allocation3], 1
  %v1020 = vld [vmem:[%s1019] ss:$8 sm:$0xf]
  %s1021 = scalar_lea.vmem [#allocation3], 2
  %v1022 = vld [vmem:[%s1021] ss:$8 sm:$0xf]
  %s1023 = scalar_lea.vmem [#allocation3], 3
  %v1024 = vld [vmem:[%s1023] ss:$8 sm:$0xf]
  %s1025 = scalar_lea.vmem [#allocation3], 4
  %v1026 = vld [vmem:[%s1025] ss:$8 sm:$0xf]
  %s1027 = scalar_lea.vmem [#allocation3], 5
  %v1028 = vld [vmem:[%s1027] ss:$8 sm:$0xf]
  %s1029 = scalar_lea.vmem [#allocation3], 6
  %v1030 = vld [vmem:[%s1029] ss:$8 sm:$0xf]
  %s1031 = scalar_lea.vmem [#allocation3], 7
  %v1032 = vld [vmem:[%s1031] ss:$8 sm:$0xf]
  %1034 = vrot.lane.b32.xlu0 %v1020, 32
  %v1035 = vpop.permute.xlu0 %1034
  %1038 = vrot.lane.b32.xlu0 %v1022, 64
  %v1039 = vpop.permute.xlu0 %1038
  %1042 = vrot.lane.b32.xlu0 %v1024, 96
  %v1043 = vpop.permute.xlu0 %1042
  %1046 = vrot.lane.b32.xlu0 %v1028, 32
  %v1047 = vpop.permute.xlu0 %1046
  %1050 = vrot.lane.b32.xlu0 %v1030, 64
  %v1051 = vpop.permute.xlu0 %1050
  %1054 = vrot.lane.b32.xlu0 %v1032, 96
  %v1055 = vpop.permute.xlu0 %1054
  %v1057 = vsel %vm812, %v1018, %v1035
  %v1058 = vsel %vm830, %v1057, %v1039
  %vm1059 = vcmask 785408
  %v1060 = vsel %vm1059, %v1058, %v1043
  %v1061 = vsel %vm812, %v1026, %v1047
  %v1062 = vsel %vm830, %v1061, %v1051
  %v1063 = vsel %vm1059, %v1062, %v1055
  %v1064 = vpack.c.bf16 %v1060, %v1060
  %v1065 = vpack.c.bf16 %v1063, %v1063
  %v1066 = vlaneseq
  %v1067 = vshrl.u32 %v1066, 7
  %v1068 = vsub.s32 0, %v1067
  %v1069 = vrot.slane %v60, %v1068
  %v1102 = vunpack.c.l.b16 %v26
  %v1103 = vunpack.c.l.b16 %v27
  %v1104 = vunpack.c.l.b16 %v28
  %v1105 = vunpack.c.l.b16 %v29
  %v1106 = vunpack.c.l.b16 %v30
  %v1107 = vunpack.c.l.b16 %v31
  %v1108 = vunpack.c.l.b16 %v32
  %v1109 = vunpack.c.l.b16 %v33
  %v1110 = vunpack.c.l.b16 %v34
  %v1111 = vunpack.c.l.b16 %v35
  %v1112 = vunpack.c.l.b16 %v36
  %v1113 = vunpack.c.l.b16 %v37
  %v1114 = vunpack.c.l.b16 %v38
  %v1115 = vunpack.c.l.b16 %v39
  %v1116 = vunpack.c.l.b16 %v40
  %v1117 = vunpack.c.l.b16 %v41
  %v1118 = vunpack.c.l.b16 %v42
  %v1119 = vunpack.c.l.b16 %v43
  %v1120 = vunpack.c.l.b16 %v44
  %v1121 = vunpack.c.l.b16 %v45
  %v1122 = vunpack.c.l.b16 %v46
  %v1123 = vunpack.c.l.b16 %v47
  %v1124 = vunpack.c.l.b16 %v48
  %v1125 = vunpack.c.l.b16 %v49
  %v1126 = vunpack.c.l.b16 %v50
  %v1127 = vunpack.c.l.b16 %v51
  %v1128 = vunpack.c.l.b16 %v52
  %v1129 = vunpack.c.l.b16 %v53
  %v1130 = vunpack.c.l.b16 %v54
  %v1131 = vunpack.c.l.b16 %v55
  %v1132 = vunpack.c.l.b16 %v56
  %v1133 = vunpack.c.l.b16 %v57
  %v1134 = vpack.c.b16 %v1103, %v1102
  %v1135 = vpack.c.b16 %v1105, %v1104
  %v1136 = vpack.c.b16 %v1107, %v1106
  %v1137 = vpack.c.b16 %v1109, %v1108
  %v1138 = vpack.c.b16 %v1111, %v1110
  %v1139 = vpack.c.b16 %v1113, %v1112
  %v1140 = vpack.c.b16 %v1115, %v1114
  %v1141 = vpack.c.b16 %v1117, %v1116
  %v1142 = vpack.c.b16 %v1119, %v1118
  %v1143 = vpack.c.b16 %v1121, %v1120
  %v1144 = vpack.c.b16 %v1123, %v1122
  %v1145 = vpack.c.b16 %v1125, %v1124
  %v1146 = vpack.c.b16 %v1127, %v1126
  %v1147 = vpack.c.b16 %v1129, %v1128
  %v1148 = vpack.c.b16 %v1131, %v1130
  %v1149 = vpack.c.b16 %v1133, %v1132
  %1166 = vmatprep.subr.bf16.mxu0 0
  %1167 = vmatpush1.bf16.msra.mxu0 %v1134
  %1168 = vmatprep.subr.bf16.mxu0 0
  %1169 = vmatpush1.bf16.msra.mxu0 %v1135
  %1170 = vmatprep.subr.bf16.mxu0 0
  %1171 = vmatpush1.bf16.msra.mxu0 %v1136
  %1172 = vmatprep.subr.bf16.mxu0 0
  %1173 = vmatpush1.bf16.msra.mxu0 %v1137
  %1174 = vmatprep.subr.bf16.mxu0 0
  %1175 = vmatpush1.bf16.msra.mxu0 %v1138
  %1176 = vmatprep.subr.bf16.mxu0 0
  %1177 = vmatpush1.bf16.msra.mxu0 %v1139
  %1178 = vmatprep.subr.bf16.mxu0 0
  %1179 = vmatpush1.bf16.msra.mxu0 %v1140
  %1180 = vmatprep.subr.bf16.mxu0 0
  %1181 = vmatpush1.bf16.msra.mxu0 %v1141
  %1182 = vmatprep.subr.bf16.mxu0 0
  %1183 = vmatpush1.bf16.msra.mxu0 %v1142
  %1184 = vmatprep.subr.bf16.mxu0 0
  %1185 = vmatpush1.bf16.msra.mxu0 %v1143
  %1186 = vmatprep.subr.bf16.mxu0 0
  %1187 = vmatpush1.bf16.msra.mxu0 %v1144
  %1188 = vmatprep.subr.bf16.mxu0 0
  %1189 = vmatpush1.bf16.msra.mxu0 %v1145
  %1190 = vmatprep.subr.bf16.mxu0 0
  %1191 = vmatpush1.bf16.msra.mxu0 %v1146
  %1192 = vmatprep.subr.bf16.mxu0 0
  %1193 = vmatpush1.bf16.msra.mxu0 %v1147
  %1194 = vmatprep.subr.bf16.mxu0 0
  %1195 = vmatpush1.bf16.msra.mxu0 %v1148
  %1196 = vmatprep.subr.bf16.mxu0 0
  %1197 = vmatpush1.bf16.msra.mxu0 %v1149
  %1198 = vmatprep.mubr.bf16.mxu0 %v1065
  %1199 = vmatmul.mubr.bf16.gmra.mrb[0].mxu0 %v1064
  %v1200 = vpop.f32.mrb[0].mxu0
  %v1201 = vadd.f32 %v1069, %v1200
  %v1202 = vpop.f32.mrb[0].mxu0
  %v1203 = vpop.f32.mrb[0].mxu0
  %v1204 = vpop.f32.mrb[0].mxu0
  %1205 = vdwg.mxu0
  %v1206 = vadd.f32 %v1201, 0.0
  %v1207 = vsub.f32 %v1206, %v534
  %vm1208 = vcmp.gt.f32.partialorder %v1207, 1.0
  %v1209 = vsel %vm1208, 1, 0
  %v1210 = vcvt.s32.f32 %v1209
  %v1211 = vadd.f32 %v1210, 0.0
  %v1212 = vmul.f32 %v543, 0.9
  %v1213 = vmul.f32 %v544, 0.9
  %v1214 = vmul.f32 %v545, 0.9
  %v1215 = vmul.f32 %v546, 0.9
  %v1216 = vmul.f32 %v547, 0.9
  %v1217 = vmul.f32 %v548, 0.9
  %v1218 = vmul.f32 %v549, 0.9
  %v1219 = vmul.f32 %v550, 0.9
  %v1220 = vadd.f32 %v1212, %v291
  %v1221 = vadd.f32 %v1213, %v292
  %v1222 = vadd.f32 %v1214, %v293
  %v1223 = vadd.f32 %v1215, %v294
  %v1224 = vadd.f32 %v1216, %v295
  %v1225 = vadd.f32 %v1217, %v296
  %v1226 = vadd.f32 %v1218, %v297
  %v1227 = vadd.f32 %v1219, %v298
  %v1228 = vsub.f32 %v1220, %v567
  %v1229 = vsub.f32 %v1221, %v568
  %v1230 = vsub.f32 %v1222, %v569
  %v1231 = vsub.f32 %v1223, %v570
  %v1232 = vsub.f32 %v1224, %v571
  %v1233 = vsub.f32 %v1225, %v572
  %v1234 = vsub.f32 %v1226, %v573
  %v1235 = vsub.f32 %v1227, %v574
  %vm1236 = vcmp.gt.f32.partialorder %v1228, 1.0
  %vm1237 = vcmp.gt.f32.partialorder %v1229, 1.0
  %vm1238 = vcmp.gt.f32.partialorder %v1230, 1.0
  %vm1239 = vcmp.gt.f32.partialorder %v1231, 1.0
  %vm1240 = vcmp.gt.f32.partialorder %v1232, 1.0
  %vm1241 = vcmp.gt.f32.partialorder %v1233, 1.0
  %vm1242 = vcmp.gt.f32.partialorder %v1234, 1.0
  %vm1243 = vcmp.gt.f32.partialorder %v1235, 1.0
  %v1244 = vsel %vm1236, 1, 0
  %v1245 = vsel %vm1237, 1, 0
  %v1246 = vsel %vm1238, 1, 0
  %v1247 = vsel %vm1239, 1, 0
  %v1248 = vsel %vm1240, 1, 0
  %v1249 = vsel %vm1241, 1, 0
  %v1250 = vsel %vm1242, 1, 0
  %v1251 = vsel %vm1243, 1, 0
  %v1252 = vcvt.s32.f32 %v1244
  %v1253 = vcvt.s32.f32 %v1245
  %v1254 = vcvt.s32.f32 %v1246
  %v1255 = vcvt.s32.f32 %v1247
  %v1256 = vcvt.s32.f32 %v1248
  %v1257 = vcvt.s32.f32 %v1249
  %v1258 = vcvt.s32.f32 %v1250
  %v1259 = vcvt.s32.f32 %v1251
  %v1260 = vrot.slane %v1252, 6
  %v1261 = vrot.slane %v1253, 6
  %v1262 = vrot.slane %v1254, 6
  %v1263 = vrot.slane %v1255, 6
  %v1264 = vrot.slane %v1256, 6
  %v1265 = vrot.slane %v1257, 6
  %v1266 = vrot.slane %v1258, 6
  %v1267 = vrot.slane %v1259, 6
  %v1268 = vsel %vm583, %v1266, %v1267
  %v1269 = vsel %vm583, %v1265, %v1266
  %v1270 = vsel %vm583, %v1264, %v1265
  %v1271 = vsel %vm583, %v1263, %v1264
  %v1272 = vsel %vm583, %v1262, %v1263
  %v1273 = vsel %vm583, %v1261, %v1262
  %v1274 = vsel %vm583, %v1260, %v1261
  %v1275 = vsel %vm583, %v1267, %v1260
  %v1276 = vsel %vm428, %v1275, 0.0
  %v1277 = vsel %vm429, %v1274, 0.0
  %v1278 = vsel %vm430, %v1273, 0.0
  %v1279 = vsel %vm431, %v1272, 0.0
  %v1280 = vsel %vm432, %v1271, 0.0
  %v1281 = vsel %vm433, %v1270, 0.0
  %v1282 = vsel %vm434, %v1269, 0.0
  %v1283 = vsel %vm435, %v1268, 0.0
  %v1284 = vrot.slane %v1252, 7
  %v1285 = vrot.slane %v1253, 7
  %v1286 = vrot.slane %v1254, 7
  %v1287 = vrot.slane %v1255, 7
  %v1288 = vrot.slane %v1256, 7
  %v1289 = vrot.slane %v1257, 7
  %v1290 = vrot.slane %v1258, 7
  %v1291 = vrot.slane %v1259, 7
  %v1292 = vsel %vm608, %v1290, %v1291
  %v1293 = vsel %vm608, %v1289, %v1290
  %v1294 = vsel %vm608, %v1288, %v1289
  %v1295 = vsel %vm608, %v1287, %v1288
  %v1296 = vsel %vm608, %v1286, %v1287
  %v1297 = vsel %vm608, %v1285, %v1286
  %v1298 = vsel %vm608, %v1284, %v1285
  %v1299 = vsel %vm608, %v1291, %v1284
  %v1300 = vsel %vm460, %v1299, 0.0
  %v1301 = vsel %vm461, %v1298, 0.0
  %v1302 = vsel %vm462, %v1297, 0.0
  %v1303 = vsel %vm463, %v1296, 0.0
  %v1304 = vsel %vm464, %v1295, 0.0
  %v1305 = vsel %vm465, %v1294, 0.0
  %v1306 = vsel %vm466, %v1293, 0.0
  %v1307 = vsel %vm467, %v1292, 0.0
  %v1308 = vrot.slane %v1252, 1
  %v1309 = vrot.slane %v1253, 1
  %v1310 = vrot.slane %v1254, 1
  %v1311 = vrot.slane %v1255, 1
  %v1312 = vrot.slane %v1256, 1
  %v1313 = vrot.slane %v1257, 1
  %v1314 = vrot.slane %v1258, 1
  %v1315 = vrot.slane %v1259, 1
  %v1316 = vsel %vm633, %v1314, %v1315
  %v1317 = vsel %vm633, %v1313, %v1314
  %v1318 = vsel %vm633, %v1312, %v1313
  %v1319 = vsel %vm633, %v1311, %v1312
  %v1320 = vsel %vm633, %v1310, %v1311
  %v1321 = vsel %vm633, %v1309, %v1310
  %v1322 = vsel %vm633, %v1308, %v1309
  %v1323 = vsel %vm633, %v1315, %v1308
  %v1324 = vsel %vm492, %v1322, 0.0
  %v1325 = vsel %vm493, %v1321, 0.0
  %v1326 = vsel %vm494, %v1320, 0.0
  %v1327 = vsel %vm495, %v1319, 0.0
  %v1328 = vsel %vm496, %v1318, 0.0
  %v1329 = vsel %vm497, %v1317, 0.0
  %v1330 = vsel %vm498, %v1316, 0.0
  %v1331 = vsel %vm499, %v1323, 0.0
  %v1332 = vrot.slane %v1252, 2
  %v1333 = vrot.slane %v1253, 2
  %v1334 = vrot.slane %v1254, 2
  %v1335 = vrot.slane %v1255, 2
  %v1336 = vrot.slane %v1256, 2
  %v1337 = vrot.slane %v1257, 2
  %v1338 = vrot.slane %v1258, 2
  %v1339 = vrot.slane %v1259, 2
  %v1340 = vsel %vm658, %v1338, %v1339
  %v1341 = vsel %vm658, %v1337, %v1338
  %v1342 = vsel %vm658, %v1336, %v1337
  %v1343 = vsel %vm658, %v1335, %v1336
  %v1344 = vsel %vm658, %v1334, %v1335
  %v1345 = vsel %vm658, %v1333, %v1334
  %v1346 = vsel %vm658, %v1332, %v1333
  %v1347 = vsel %vm658, %v1339, %v1332
  %v1348 = vsel %vm524, %v1346, 0.0
  %v1349 = vsel %vm525, %v1345, 0.0
  %v1350 = vsel %vm526, %v1344, 0.0
  %v1351 = vsel %vm527, %v1343, 0.0
  %v1352 = vsel %vm528, %v1342, 0.0
  %v1353 = vsel %vm529, %v1341, 0.0
  %v1354 = vsel %vm530, %v1340, 0.0
  %v1355 = vsel %vm531, %v1347, 0.0
  %1364 = vrot.lane.b32.xlu0 %v1300, 16
  %v1365 = vpop.permute.xlu0 %1364
  %1366 = vrot.lane.b32.xlu0 %v1301, 16
  %v1367 = vpop.permute.xlu0 %1366
  %1368 = vrot.lane.b32.xlu0 %v1302, 16
  %v1369 = vpop.permute.xlu0 %1368
  %1370 = vrot.lane.b32.xlu0 %v1303, 16
  %v1371 = vpop.permute.xlu0 %1370
  %1372 = vrot.lane.b32.xlu0 %v1304, 16
  %v1373 = vpop.permute.xlu0 %1372
  %1374 = vrot.lane.b32.xlu0 %v1305, 16
  %v1375 = vpop.permute.xlu0 %1374
  %1376 = vrot.lane.b32.xlu0 %v1306, 16
  %v1377 = vpop.permute.xlu0 %1376
  %1378 = vrot.lane.b32.xlu0 %v1307, 16
  %v1379 = vpop.permute.xlu0 %1378
  %1396 = vrot.lane.b32.xlu0 %v1252, 32
  %v1397 = vpop.permute.xlu0 %1396
  %1398 = vrot.lane.b32.xlu0 %v1253, 32
  %v1399 = vpop.permute.xlu0 %1398
  %1400 = vrot.lane.b32.xlu0 %v1254, 32
  %v1401 = vpop.permute.xlu0 %1400
  %1402 = vrot.lane.b32.xlu0 %v1255, 32
  %v1403 = vpop.permute.xlu0 %1402
  %1404 = vrot.lane.b32.xlu0 %v1256, 32
  %v1405 = vpop.permute.xlu0 %1404
  %1406 = vrot.lane.b32.xlu0 %v1257, 32
  %v1407 = vpop.permute.xlu0 %1406
  %1408 = vrot.lane.b32.xlu0 %v1258, 32
  %v1409 = vpop.permute.xlu0 %1408
  %1410 = vrot.lane.b32.xlu0 %v1259, 32
  %v1411 = vpop.permute.xlu0 %1410
  %1428 = vrot.lane.b32.xlu0 %v1324, 48
  %v1429 = vpop.permute.xlu0 %1428
  %1430 = vrot.lane.b32.xlu0 %v1325, 48
  %v1431 = vpop.permute.xlu0 %1430
  %1432 = vrot.lane.b32.xlu0 %v1326, 48
  %v1433 = vpop.permute.xlu0 %1432
  %1434 = vrot.lane.b32.xlu0 %v1327, 48
  %v1435 = vpop.permute.xlu0 %1434
  %1436 = vrot.lane.b32.xlu0 %v1328, 48
  %v1437 = vpop.permute.xlu0 %1436
  %1438 = vrot.lane.b32.xlu0 %v1329, 48
  %v1439 = vpop.permute.xlu0 %1438
  %1440 = vrot.lane.b32.xlu0 %v1330, 48
  %v1441 = vpop.permute.xlu0 %1440
  %1442 = vrot.lane.b32.xlu0 %v1331, 48
  %v1443 = vpop.permute.xlu0 %1442
  %1460 = vrot.lane.b32.xlu0 %v1348, 64
  %v1461 = vpop.permute.xlu0 %1460
  %1462 = vrot.lane.b32.xlu0 %v1349, 64
  %v1463 = vpop.permute.xlu0 %1462
  %1464 = vrot.lane.b32.xlu0 %v1350, 64
  %v1465 = vpop.permute.xlu0 %1464
  %1466 = vrot.lane.b32.xlu0 %v1351, 64
  %v1467 = vpop.permute.xlu0 %1466
  %1468 = vrot.lane.b32.xlu0 %v1352, 64
  %v1469 = vpop.permute.xlu0 %1468
  %1470 = vrot.lane.b32.xlu0 %v1353, 64
  %v1471 = vpop.permute.xlu0 %1470
  %1472 = vrot.lane.b32.xlu0 %v1354, 64
  %v1473 = vpop.permute.xlu0 %1472
  %1474 = vrot.lane.b32.xlu0 %v1355, 64
  %v1475 = vpop.permute.xlu0 %1474
  %v1484 = vsel %vm803, %v1276, %v1365
  %v1485 = vsel %vm803, %v1277, %v1367
  %v1486 = vsel %vm803, %v1278, %v1369
  %v1487 = vsel %vm803, %v1279, %v1371
  %v1488 = vsel %vm803, %v1280, %v1373
  %v1489 = vsel %vm803, %v1281, %v1375
  %v1490 = vsel %vm803, %v1282, %v1377
  %v1491 = vsel %vm803, %v1283, %v1379
  %v1492 = vsel %vm812, %v1484, %v1397
  %v1493 = vsel %vm812, %v1485, %v1399
  %v1494 = vsel %vm812, %v1486, %v1401
  %v1495 = vsel %vm812, %v1487, %v1403
  %v1496 = vsel %vm812, %v1488, %v1405
  %v1497 = vsel %vm812, %v1489, %v1407
  %v1498 = vsel %vm812, %v1490, %v1409
  %v1499 = vsel %vm812, %v1491, %v1411
  %v1500 = vsel %vm821, %v1492, %v1429
  %v1501 = vsel %vm821, %v1493, %v1431
  %v1502 = vsel %vm821, %v1494, %v1433
  %v1503 = vsel %vm821, %v1495, %v1435
  %v1504 = vsel %vm821, %v1496, %v1437
  %v1505 = vsel %vm821, %v1497, %v1439
  %v1506 = vsel %vm821, %v1498, %v1441
  %v1507 = vsel %vm821, %v1499, %v1443
  %v1508 = vsel %vm830, %v1500, %v1461
  %v1509 = vsel %vm830, %v1501, %v1463
  %v1510 = vsel %vm830, %v1502, %v1465
  %v1511 = vsel %vm830, %v1503, %v1467
  %v1512 = vsel %vm830, %v1504, %v1469
  %v1513 = vsel %vm830, %v1505, %v1471
  %v1514 = vsel %vm830, %v1506, %v1473
  %v1515 = vsel %vm830, %v1507, %v1475
  %v1516 = vpack.c.bf16 %v1509, %v1508
  %v1517 = vpack.c.bf16 %v1511, %v1510
  %v1518 = vpack.c.bf16 %v1513, %v1512
  %v1519 = vpack.c.bf16 %v1515, %v1514
  %v1521 = vsel %vm877, %v1516, 0
  %v1524 = vsel %vm877, %v1517, 0
  %v1527 = vsel %vm877, %v1518, 0
  %v1530 = vsel %vm877, %v1519, 0
  %1532 = vmatprep.subr.bf16.mxu0 0
  %1533 = vmatpush1.bf16.msra.mxu0 %v867
  %1534 = vmatprep.subr.bf16.mxu0 0
  %1535 = vmatpush1.bf16.msra.mxu0 %v868
  %1536 = vmatprep.subr.bf16.mxu0 0
  %1537 = vmatpush1.bf16.msra.mxu0 %v869
  %1538 = vmatprep.subr.bf16.mxu0 0
  %1539 = vmatpush1.bf16.msra.mxu0 %v870
  %1540 = vmatprep.subr.bf16.mxu0 0
  %1541 = vmatpush1.bf16.msra.mxu0 %v871
  %1542 = vmatprep.subr.bf16.mxu0 0
  %1543 = vmatpush1.bf16.msra.mxu0 0
  %1544 = vmatprep.subr.bf16.mxu0 0
  %1545 = vmatpush1.bf16.msra.mxu0 0
  %1546 = vmatprep.subr.bf16.mxu0 0
  %1547 = vmatpush1.bf16.msra.mxu0 0
  %1548 = vmatprep.subr.bf16.mxu0 0
  %1549 = vmatpush1.bf16.msra.mxu0 0
  %1550 = vmatprep.subr.bf16.mxu0 0
  %1551 = vmatpush1.bf16.msra.mxu0 0
  %1552 = vmatprep.subr.bf16.mxu0 0
  %1553 = vmatpush1.bf16.msra.mxu0 0
  %1554 = vmatprep.subr.bf16.mxu0 0
  %1555 = vmatpush1.bf16.msra.mxu0 0
  %1556 = vmatprep.subr.bf16.mxu0 0
  %1557 = vmatpush1.bf16.msra.mxu0 0
  %1558 = vmatprep.subr.bf16.mxu0 0
  %1559 = vmatpush1.bf16.msra.mxu0 0
  %1560 = vmatprep.subr.bf16.mxu0 0
  %1561 = vmatpush1.bf16.msra.mxu0 0
  %1562 = vmatprep.subr.bf16.mxu0 0
  %1563 = vmatpush1.bf16.msra.mxu0 0
  %1564 = vmatprep.mubr.bf16.mxu0 0
  %1565 = vmatmul.mubr.bf16.gmra.mrb[0].mxu0 %v1521
  %v1566 = vpop.f32.mrb[0].mxu0
  %v1567 = vadd.f32 %v846, %v1566
  %v1568 = vpop.f32.mrb[0].mxu0
  %v1569 = vpop.f32.mrb[0].mxu0
  %v1570 = vadd.f32 %v846, %v1569
  %v1571 = vpop.f32.mrb[0].mxu0
  %1572 = vmatprep.mubr.bf16.mxu0 0
  %1573 = vmatmul.mubr.bf16.gmra.mrb[0].mxu0 %v1524
  %v1574 = vpop.f32.mrb[0].mxu0
  %v1575 = vadd.f32 %v846, %v1574
  %v1576 = vpop.f32.mrb[0].mxu0
  %v1577 = vpop.f32.mrb[0].mxu0
  %v1578 = vadd.f32 %v846, %v1577
  %v1579 = vpop.f32.mrb[0].mxu0
  %1580 = vmatprep.mubr.bf16.mxu0 0
  %1581 = vmatmul.mubr.bf16.gmra.mrb[0].mxu0 %v1527
  %v1582 = vpop.f32.mrb[0].mxu0
  %v1583 = vadd.f32 %v846, %v1582
  %v1584 = vpop.f32.mrb[0].mxu0
  %v1585 = vpop.f32.mrb[0].mxu0
  %v1586 = vadd.f32 %v846, %v1585
  %v1587 = vpop.f32.mrb[0].mxu0
  %1588 = vmatprep.mubr.bf16.mxu0 0
  %1589 = vmatmul.mubr.bf16.gmra.mrb[0].mxu0 %v1530
  %v1590 = vpop.f32.mrb[0].mxu0
  %v1591 = vadd.f32 %v846, %v1590
  %v1592 = vpop.f32.mrb[0].mxu0
  %v1593 = vpop.f32.mrb[0].mxu0
  %v1594 = vadd.f32 %v846, %v1593
  %v1595 = vpop.f32.mrb[0].mxu0
  %1596 = vdwg.mxu0
  %v1597 = vrot.slane %v1567, 1
  %v1598 = vrot.slane %v1570, 1
  %v1599 = vrot.slane %v1575, 1
  %v1600 = vrot.slane %v1578, 1
  %v1601 = vrot.slane %v1583, 1
  %v1602 = vrot.slane %v1586, 1
  %v1603 = vrot.slane %v1591, 1
  %v1604 = vrot.slane %v1594, 1
  %v1605 = vsel %vm633, %v1603, %v1604
  %v1606 = vsel %vm633, %v1602, %v1603
  %v1607 = vsel %vm633, %v1601, %v1602
  %v1608 = vsel %vm633, %v1600, %v1601
  %v1609 = vsel %vm633, %v1599, %v1600
  %v1610 = vsel %vm633, %v1598, %v1599
  %v1611 = vsel %vm633, %v1597, %v1598
  %v1612 = vsel %vm633, %v1604, %v1597
  %v1613 = vmax.f32 %v1567, %v1611
  %v1614 = vmax.f32 %v1570, %v1610
  %v1615 = vmax.f32 %v1575, %v1609
  %v1616 = vmax.f32 %v1578, %v1608
  %v1617 = vmax.f32 %v1583, %v1607
  %v1618 = vmax.f32 %v1586, %v1606
  %v1619 = vmax.f32 %v1591, %v1605
  %v1620 = vmax.f32 %v1594, %v1612
  %1621 = vst.msk [vmem:[#allocation2] sm:$0xff] %vm812, %v1613
  %1622 = vst.msk [vmem:[#allocation2 + $0x8] sm:$0xff] %vm812, %v1614
  %1623 = vst.msk [vmem:[#allocation2 + $0x10] sm:$0xff] %vm812, %v1615
  %1624 = vst.msk [vmem:[#allocation2 + $0x18] sm:$0xff] %vm812, %v1616
  %1625 = vst.msk [vmem:[#allocation2 + $0x20] sm:$0xff] %vm812, %v1617
  %1626 = vst.msk [vmem:[#allocation2 + $0x28] sm:$0xff] %vm812, %v1618
  %1627 = vst.msk [vmem:[#allocation2 + $0x30] sm:$0xff] %vm812, %v1619
  %1628 = vst.msk [vmem:[#allocation2 + $0x38] sm:$0xff] %vm812, %v1620
  %v1629 = vld [vmem:[#allocation2] ss:$2 sm:$0xff]
  %v1630 = vld [vmem:[%s988] ss:$2 sm:$0xff]
  %v1631 = vld [vmem:[%s990] ss:$2 sm:$0xff]
  %v1632 = vld [vmem:[%s992] ss:$2 sm:$0xff]
  %v1633 = vmul.f32 %v998, 0.9
  %v1634 = vmul.f32 %v999, 0.9
  %v1635 = vmul.f32 %v1000, 0.9
  %v1636 = vmul.f32 %v1001, 0.9
  %v1637 = vadd.f32 %v1633, %v1629
  %v1638 = vadd.f32 %v1634, %v1630
  %v1639 = vadd.f32 %v1635, %v1631
  %v1640 = vadd.f32 %v1636, %v1632
  %v1641 = vsub.f32 %v1637, %v1010
  %v1642 = vsub.f32 %v1638, %v1011
  %v1643 = vsub.f32 %v1639, %v1012
  %v1644 = vsub.f32 %v1640, %v1013
  %vm1645 = vcmp.gt.f32.partialorder %v1641, 1.0
  %vm1646 = vcmp.gt.f32.partialorder %v1642, 1.0
  %vm1647 = vcmp.gt.f32.partialorder %v1643, 1.0
  %vm1648 = vcmp.gt.f32.partialorder %v1644, 1.0
  %v1649 = vsel %vm1645, 1, 0
  %v1650 = vsel %vm1646, 1, 0
  %v1651 = vsel %vm1647, 1, 0
  %v1652 = vsel %vm1648, 1, 0
  %v1653 = vcvt.s32.f32 %v1649
  %v1654 = vcvt.s32.f32 %v1650
  %v1655 = vcvt.s32.f32 %v1651
  %v1656 = vcvt.s32.f32 %v1652
  %1657 = vst.msk [vmem:[#allocation3] sm:$0xff] %vm812, %v1653
  %1658 = vst.msk [vmem:[#allocation3 + $0x8] sm:$0xff] %vm812, %v1654
  %1659 = vst.msk [vmem:[#allocation3 + $0x10] sm:$0xff] %vm812, %v1655
  %1660 = vst.msk [vmem:[#allocation3 + $0x18] sm:$0xff] %vm812, %v1656
  %v1661 = vld [vmem:[#allocation3] ss:$8 sm:$0xf]
  %v1662 = vld [vmem:[%s1019] ss:$8 sm:$0xf]
  %v1663 = vld [vmem:[%s1021] ss:$8 sm:$0xf]
  %v1664 = vld [vmem:[%s1023] ss:$8 sm:$0xf]
  %v1665 = vld [vmem:[%s1025] ss:$8 sm:$0xf]
  %v1666 = vld [vmem:[%s1027] ss:$8 sm:$0xf]
  %v1667 = vld [vmem:[%s1029] ss:$8 sm:$0xf]
  %v1668 = vld [vmem:[%s1031] ss:$8 sm:$0xf]
  %1670 = vrot.lane.b32.xlu0 %v1662, 32
  %v1671 = vpop.permute.xlu0 %1670
  %1674 = vrot.lane.b32.xlu0 %v1663, 64
  %v1675 = vpop.permute.xlu0 %1674
  %1678 = vrot.lane.b32.xlu0 %v1664, 96
  %v1679 = vpop.permute.xlu0 %1678
  %1682 = vrot.lane.b32.xlu0 %v1666, 32
  %v1683 = vpop.permute.xlu0 %1682
  %1686 = vrot.lane.b32.xlu0 %v1667, 64
  %v1687 = vpop.permute.xlu0 %1686
  %1690 = vrot.lane.b32.xlu0 %v1668, 96
  %v1691 = vpop.permute.xlu0 %1690
  %v1693 = vsel %vm812, %v1661, %v1671
  %v1694 = vsel %vm830, %v1693, %v1675
  %v1695 = vsel %vm1059, %v1694, %v1679
  %v1696 = vsel %vm812, %v1665, %v1683
  %v1697 = vsel %vm830, %v1696, %v1687
  %v1698 = vsel %vm1059, %v1697, %v1691
  %v1699 = vpack.c.bf16 %v1695, %v1695
  %v1700 = vpack.c.bf16 %v1698, %v1698
  %1701 = vmatprep.subr.bf16.mxu0 0
  %1702 = vmatpush1.bf16.msra.mxu0 %v1134
  %1703 = vmatprep.subr.bf16.mxu0 0
  %1704 = vmatpush1.bf16.msra.mxu0 %v1135
  %1705 = vmatprep.subr.bf16.mxu0 0
  %1706 = vmatpush1.bf16.msra.mxu0 %v1136
  %1707 = vmatprep.subr.bf16.mxu0 0
  %1708 = vmatpush1.bf16.msra.mxu0 %v1137
  %1709 = vmatprep.subr.bf16.mxu0 0
  %1710 = vmatpush1.bf16.msra.mxu0 %v1138
  %1711 = vmatprep.subr.bf16.mxu0 0
  %1712 = vmatpush1.bf16.msra.mxu0 %v1139
  %1713 = vmatprep.subr.bf16.mxu0 0
  %1714 = vmatpush1.bf16.msra.mxu0 %v1140
  %1715 = vmatprep.subr.bf16.mxu0 0
  %1716 = vmatpush1.bf16.msra.mxu0 %v1141
  %1717 = vmatprep.subr.bf16.mxu0 0
  %1718 = vmatpush1.bf16.msra.mxu0 %v1142
  %1719 = vmatprep.subr.bf16.mxu0 0
  %1720 = vmatpush1.bf16.msra.mxu0 %v1143
  %1721 = vmatprep.subr.bf16.mxu0 0
  %1722 = vmatpush1.bf16.msra.mxu0 %v1144
  %1723 = vmatprep.subr.bf16.mxu0 0
  %1724 = vmatpush1.bf16.msra.mxu0 %v1145
  %1725 = vmatprep.subr.bf16.mxu0 0
  %1726 = vmatpush1.bf16.msra.mxu0 %v1146
  %1727 = vmatprep.subr.bf16.mxu0 0
  %1728 = vmatpush1.bf16.msra.mxu0 %v1147
  %1729 = vmatprep.subr.bf16.mxu0 0
  %1730 = vmatpush1.bf16.msra.mxu0 %v1148
  %1731 = vmatprep.subr.bf16.mxu0 0
  %1732 = vmatpush1.bf16.msra.mxu0 %v1149
  %1733 = vmatprep.mubr.bf16.mxu0 %v1700
  %1734 = vmatmul.mubr.bf16.gmra.mrb[0].mxu0 %v1699
  %v1735 = vpop.f32.mrb[0].mxu0
  %v1736 = vadd.f32 %v1069, %v1735
  %v1737 = vpop.f32.mrb[0].mxu0
  %v1738 = vpop.f32.mrb[0].mxu0
  %v1739 = vpop.f32.mrb[0].mxu0
  %1740 = vdwg.mxu0
  %v1741 = vmul.f32 %v1207, 0.9
  %v1742 = vadd.f32 %v1741, %v1736
  %v1743 = vsub.f32 %v1742, %v1210
  %vm1744 = vcmp.gt.f32.partialorder %v1743, 1.0
  %v1745 = vsel %vm1744, 1, 0
  %v1746 = vcvt.s32.f32 %v1745
  %v1747 = vadd.f32 %v1211, %v1746
  %v1748 = vmul.f32 %v1228, 0.9
  %v1749 = vmul.f32 %v1229, 0.9
  %v1750 = vmul.f32 %v1230, 0.9
  %v1751 = vmul.f32 %v1231, 0.9
  %v1752 = vmul.f32 %v1232, 0.9
  %v1753 = vmul.f32 %v1233, 0.9
  %v1754 = vmul.f32 %v1234, 0.9
  %v1755 = vmul.f32 %v1235, 0.9
  %v1756 = vadd.f32 %v1748, %v291
  %v1757 = vadd.f32 %v1749, %v292
  %v1758 = vadd.f32 %v1750, %v293
  %v1759 = vadd.f32 %v1751, %v294
  %v1760 = vadd.f32 %v1752, %v295
  %v1761 = vadd.f32 %v1753, %v296
  %v1762 = vadd.f32 %v1754, %v297
  %v1763 = vadd.f32 %v1755, %v298
  %v1764 = vsub.f32 %v1756, %v1252
  %v1765 = vsub.f32 %v1757, %v1253
  %v1766 = vsub.f32 %v1758, %v1254
  %v1767 = vsub.f32 %v1759, %v1255
  %v1768 = vsub.f32 %v1760, %v1256
  %v1769 = vsub.f32 %v1761, %v1257
  %v1770 = vsub.f32 %v1762, %v1258
  %v1771 = vsub.f32 %v1763, %v1259
  %vm1772 = vcmp.gt.f32.partialorder %v1764, 1.0
  %vm1773 = vcmp.gt.f32.partialorder %v1765, 1.0
  %vm1774 = vcmp.gt.f32.partialorder %v1766, 1.0
  %vm1775 = vcmp.gt.f32.partialorder %v1767, 1.0
  %vm1776 = vcmp.gt.f32.partialorder %v1768, 1.0
  %vm1777 = vcmp.gt.f32.partialorder %v1769, 1.0
  %vm1778 = vcmp.gt.f32.partialorder %v1770, 1.0
  %vm1779 = vcmp.gt.f32.partialorder %v1771, 1.0
  %v1780 = vsel %vm1772, 1, 0
  %v1781 = vsel %vm1773, 1, 0
  %v1782 = vsel %vm1774, 1, 0
  %v1783 = vsel %vm1775, 1, 0
  %v1784 = vsel %vm1776, 1, 0
  %v1785 = vsel %vm1777, 1, 0
  %v1786 = vsel %vm1778, 1, 0
  %v1787 = vsel %vm1779, 1, 0
  %v1788 = vcvt.s32.f32 %v1780
  %v1789 = vcvt.s32.f32 %v1781
  %v1790 = vcvt.s32.f32 %v1782
  %v1791 = vcvt.s32.f32 %v1783
  %v1792 = vcvt.s32.f32 %v1784
  %v1793 = vcvt.s32.f32 %v1785
  %v1794 = vcvt.s32.f32 %v1786
  %v1795 = vcvt.s32.f32 %v1787
  %v1796 = vrot.slane %v1788, 6
  %v1797 = vrot.slane %v1789, 6
  %v1798 = vrot.slane %v1790, 6
  %v1799 = vrot.slane %v1791, 6
  %v1800 = vrot.slane %v1792, 6
  %v1801 = vrot.slane %v1793, 6
  %v1802 = vrot.slane %v1794, 6
  %v1803 = vrot.slane %v1795, 6
  %v1804 = vsel %vm583, %v1802, %v1803
  %v1805 = vsel %vm583, %v1801, %v1802
  %v1806 = vsel %vm583, %v1800, %v1801
  %v1807 = vsel %vm583, %v1799, %v1800
  %v1808 = vsel %vm583, %v1798, %v1799
  %v1809 = vsel %vm583, %v1797, %v1798
  %v1810 = vsel %vm583, %v1796, %v1797
  %v1811 = vsel %vm583, %v1803, %v1796
  %v1812 = vsel %vm428, %v1811, 0.0
  %v1813 = vsel %vm429, %v1810, 0.0
  %v1814 = vsel %vm430, %v1809, 0.0
  %v1815 = vsel %vm431, %v1808, 0.0
  %v1816 = vsel %vm432, %v1807, 0.0
  %v1817 = vsel %vm433, %v1806, 0.0
  %v1818 = vsel %vm434, %v1805, 0.0
  %v1819 = vsel %vm435, %v1804, 0.0
  %v1820 = vrot.slane %v1788, 7
  %v1821 = vrot.slane %v1789, 7
  %v1822 = vrot.slane %v1790, 7
  %v1823 = vrot.slane %v1791, 7
  %v1824 = vrot.slane %v1792, 7
  %v1825 = vrot.slane %v1793, 7
  %v1826 = vrot.slane %v1794, 7
  %v1827 = vrot.slane %v1795, 7
  %v1828 = vsel %vm608, %v1826, %v1827
  %v1829 = vsel %vm608, %v1825, %v1826
  %v1830 = vsel %vm608, %v1824, %v1825
  %v1831 = vsel %vm608, %v1823, %v1824
  %v1832 = vsel %vm608, %v1822, %v1823
  %v1833 = vsel %vm608, %v1821, %v1822
  %v1834 = vsel %vm608, %v1820, %v1821
  %v1835 = vsel %vm608, %v1827, %v1820
  %v1836 = vsel %vm460, %v1835, 0.0
  %v1837 = vsel %vm461, %v1834, 0.0
  %v1838 = vsel %vm462, %v1833, 0.0
  %v1839 = vsel %vm463, %v1832, 0.0
  %v1840 = vsel %vm464, %v1831, 0.0
  %v1841 = vsel %vm465, %v1830, 0.0
  %v1842 = vsel %vm466, %v1829, 0.0
  %v1843 = vsel %vm467, %v1828, 0.0
  %v1844 = vrot.slane %v1788, 1
  %v1845 = vrot.slane %v1789, 1
  %v1846 = vrot.slane %v1790, 1
  %v1847 = vrot.slane %v1791, 1
  %v1848 = vrot.slane %v1792, 1
  %v1849 = vrot.slane %v1793, 1
  %v1850 = vrot.slane %v1794, 1
  %v1851 = vrot.slane %v1795, 1
  %v1852 = vsel %vm633, %v1850, %v1851
  %v1853 = vsel %vm633, %v1849, %v1850
  %v1854 = vsel %vm633, %v1848, %v1849
  %v1855 = vsel %vm633, %v1847, %v1848
  %v1856 = vsel %vm633, %v1846, %v1847
  %v1857 = vsel %vm633, %v1845, %v1846
  %v1858 = vsel %vm633, %v1844, %v1845
  %v1859 = vsel %vm633, %v1851, %v1844
  %v1860 = vsel %vm492, %v1858, 0.0
  %v1861 = vsel %vm493, %v1857, 0.0
  %v1862 = vsel %vm494, %v1856, 0.0
  %v1863 = vsel %vm495, %v1855, 0.0
  %v1864 = vsel %vm496, %v1854, 0.0
  %v1865 = vsel %vm497, %v1853, 0.0
  %v1866 = vsel %vm498, %v1852, 0.0
  %v1867 = vsel %vm499, %v1859, 0.0
  %v1868 = vrot.slane %v1788, 2
  %v1869 = vrot.slane %v1789, 2
  %v1870 = vrot.slane %v1790, 2
  %v1871 = vrot.slane %v1791, 2
  %v1872 = vrot.slane %v1792, 2
  %v1873 = vrot.slane %v1793, 2
  %v1874 = vrot.slane %v1794, 2
  %v1875 = vrot.slane %v1795, 2
  %v1876 = vsel %vm658, %v1874, %v1875
  %v1877 = vsel %vm658, %v1873, %v1874
  %v1878 = vsel %vm658, %v1872, %v1873
  %v1879 = vsel %vm658, %v1871, %v1872
  %v1880 = vsel %vm658, %v1870, %v1871
  %v1881 = vsel %vm658, %v1869, %v1870
  %v1882 = vsel %vm658, %v1868, %v1869
  %v1883 = vsel %vm658, %v1875, %v1868
  %v1884 = vsel %vm524, %v1882, 0.0
  %v1885 = vsel %vm525, %v1881, 0.0
  %v1886 = vsel %vm526, %v1880, 0.0
  %v1887 = vsel %vm527, %v1879, 0.0
  %v1888 = vsel %vm528, %v1878, 0.0
  %v1889 = vsel %vm529, %v1877, 0.0
  %v1890 = vsel %vm530, %v1876, 0.0
  %v1891 = vsel %vm531, %v1883, 0.0
  %1900 = vrot.lane.b32.xlu0 %v1836, 16
  %v1901 = vpop.permute.xlu0 %1900
  %1902 = vrot.lane.b32.xlu0 %v1837, 16
  %v1903 = vpop.permute.xlu0 %1902
  %1904 = vrot.lane.b32.xlu0 %v1838, 16
  %v1905 = vpop.permute.xlu0 %1904
  %1906 = vrot.lane.b32.xlu0 %v1839, 16
  %v1907 = vpop.permute.xlu0 %1906
  %1908 = vrot.lane.b32.xlu0 %v1840, 16
  %v1909 = vpop.permute.xlu0 %1908
  %1910 = vrot.lane.b32.xlu0 %v1841, 16
  %v1911 = vpop.permute.xlu0 %1910
  %1912 = vrot.lane.b32.xlu0 %v1842, 16
  %v1913 = vpop.permute.xlu0 %1912
  %1914 = vrot.lane.b32.xlu0 %v1843, 16
  %v1915 = vpop.permute.xlu0 %1914
  %1932 = vrot.lane.b32.xlu0 %v1788, 32
  %v1933 = vpop.permute.xlu0 %1932
  %1934 = vrot.lane.b32.xlu0 %v1789, 32
  %v1935 = vpop.permute.xlu0 %1934
  %1936 = vrot.lane.b32.xlu0 %v1790, 32
  %v1937 = vpop.permute.xlu0 %1936
  %1938 = vrot.lane.b32.xlu0 %v1791, 32
  %v1939 = vpop.permute.xlu0 %1938
  %1940 = vrot.lane.b32.xlu0 %v1792, 32
  %v1941 = vpop.permute.xlu0 %1940
  %1942 = vrot.lane.b32.xlu0 %v1793, 32
  %v1943 = vpop.permute.xlu0 %1942
  %1944 = vrot.lane.b32.xlu0 %v1794, 32
  %v1945 = vpop.permute.xlu0 %1944
  %1946 = vrot.lane.b32.xlu0 %v1795, 32
  %v1947 = vpop.permute.xlu0 %1946
  %1964 = vrot.lane.b32.xlu0 %v1860, 48
  %v1965 = vpop.permute.xlu0 %1964
  %1966 = vrot.lane.b32.xlu0 %v1861, 48
  %v1967 = vpop.permute.xlu0 %1966
  %1968 = vrot.lane.b32.xlu0 %v1862, 48
  %v1969 = vpop.permute.xlu0 %1968
  %1970 = vrot.lane.b32.xlu0 %v1863, 48
  %v1971 = vpop.permute.xlu0 %1970
  %1972 = vrot.lane.b32.xlu0 %v1864, 48
  %v1973 = vpop.permute.xlu0 %1972
  %1974 = vrot.lane.b32.xlu0 %v1865, 48
  %v1975 = vpop.permute.xlu0 %1974
  %1976 = vrot.lane.b32.xlu0 %v1866, 48
  %v1977 = vpop.permute.xlu0 %1976
  %1978 = vrot.lane.b32.xlu0 %v1867, 48
  %v1979 = vpop.permute.xlu0 %1978
  %1996 = vrot.lane.b32.xlu0 %v1884, 64
  %v1997 = vpop.permute.xlu0 %1996
  %1998 = vrot.lane.b32.xlu0 %v1885, 64
  %v1999 = vpop.permute.xlu0 %1998
  %2000 = vrot.lane.b32.xlu0 %v1886, 64
  %v2001 = vpop.permute.xlu0 %2000
  %2002 = vrot.lane.b32.xlu0 %v1887, 64
  %v2003 = vpop.permute.xlu0 %2002
  %2004 = vrot.lane.b32.xlu0 %v1888, 64
  %v2005 = vpop.permute.xlu0 %2004
  %2006 = vrot.lane.b32.xlu0 %v1889, 64
  %v2007 = vpop.permute.xlu0 %2006
  %2008 = vrot.lane.b32.xlu0 %v1890, 64
  %v2009 = vpop.permute.xlu0 %2008
  %2010 = vrot.lane.b32.xlu0 %v1891, 64
  %v2011 = vpop.permute.xlu0 %2010
  %v2020 = vsel %vm803, %v1812, %v1901
  %v2021 = vsel %vm803, %v1813, %v1903
  %v2022 = vsel %vm803, %v1814, %v1905
  %v2023 = vsel %vm803, %v1815, %v1907
  %v2024 = vsel %vm803, %v1816, %v1909
  %v2025 = vsel %vm803, %v1817, %v1911
  %v2026 = vsel %vm803, %v1818, %v1913
  %v2027 = vsel %vm803, %v1819, %v1915
  %v2028 = vsel %vm812, %v2020, %v1933
  %v2029 = vsel %vm812, %v2021, %v1935
  %v2030 = vsel %vm812, %v2022, %v1937
  %v2031 = vsel %vm812, %v2023, %v1939
  %v2032 = vsel %vm812, %v2024, %v1941
  %v2033 = vsel %vm812, %v2025, %v1943
  %v2034 = vsel %vm812, %v2026, %v1945
  %v2035 = vsel %vm812, %v2027, %v1947
  %v2036 = vsel %vm821, %v2028, %v1965
  %v2037 = vsel %vm821, %v2029, %v1967
  %v2038 = vsel %vm821, %v2030, %v1969
  %v2039 = vsel %vm821, %v2031, %v1971
  %v2040 = vsel %vm821, %v2032, %v1973
  %v2041 = vsel %vm821, %v2033, %v1975
  %v2042 = vsel %vm821, %v2034, %v1977
  %v2043 = vsel %vm821, %v2035, %v1979
  %v2044 = vsel %vm830, %v2036, %v1997
  %v2045 = vsel %vm830, %v2037, %v1999
  %v2046 = vsel %vm830, %v2038, %v2001
  %v2047 = vsel %vm830, %v2039, %v2003
  %v2048 = vsel %vm830, %v2040, %v2005
  %v2049 = vsel %vm830, %v2041, %v2007
  %v2050 = vsel %vm830, %v2042, %v2009
  %v2051 = vsel %vm830, %v2043, %v2011
  %v2052 = vpack.c.bf16 %v2045, %v2044
  %v2053 = vpack.c.bf16 %v2047, %v2046
  %v2054 = vpack.c.bf16 %v2049, %v2048
  %v2055 = vpack.c.bf16 %v2051, %v2050
  %v2057 = vsel %vm877, %v2052, 0
  %v2060 = vsel %vm877, %v2053, 0
  %v2063 = vsel %vm877, %v2054, 0
  %v2066 = vsel %vm877, %v2055, 0
  %2068 = vmatprep.subr.bf16.mxu0 0
  %2069 = vmatpush1.bf16.msra.mxu0 %v867
  %2070 = vmatprep.subr.bf16.mxu0 0
  %2071 = vmatpush1.bf16.msra.mxu0 %v868
  %2072 = vmatprep.subr.bf16.mxu0 0
  %2073 = vmatpush1.bf16.msra.mxu0 %v869
  %2074 = vmatprep.subr.bf16.mxu0 0
  %2075 = vmatpush1.bf16.msra.mxu0 %v870
  %2076 = vmatprep.subr.bf16.mxu0 0
  %2077 = vmatpush1.bf16.msra.mxu0 %v871
  %2078 = vmatprep.subr.bf16.mxu0 0
  %2079 = vmatpush1.bf16.msra.mxu0 0
  %2080 = vmatprep.subr.bf16.mxu0 0
  %2081 = vmatpush1.bf16.msra.mxu0 0
  %2082 = vmatprep.subr.bf16.mxu0 0
  %2083 = vmatpush1.bf16.msra.mxu0 0
  %2084 = vmatprep.subr.bf16.mxu0 0
  %2085 = vmatpush1.bf16.msra.mxu0 0
  %2086 = vmatprep.subr.bf16.mxu0 0
  %2087 = vmatpush1.bf16.msra.mxu0 0
  %2088 = vmatprep.subr.bf16.mxu0 0
  %2089 = vmatpush1.bf16.msra.mxu0 0
  %2090 = vmatprep.subr.bf16.mxu0 0
  %2091 = vmatpush1.bf16.msra.mxu0 0
  %2092 = vmatprep.subr.bf16.mxu0 0
  %2093 = vmatpush1.bf16.msra.mxu0 0
  %2094 = vmatprep.subr.bf16.mxu0 0
  %2095 = vmatpush1.bf16.msra.mxu0 0
  %2096 = vmatprep.subr.bf16.mxu0 0
  %2097 = vmatpush1.bf16.msra.mxu0 0
  %2098 = vmatprep.subr.bf16.mxu0 0
  %2099 = vmatpush1.bf16.msra.mxu0 0
  %2100 = vmatprep.mubr.bf16.mxu0 0
  %2101 = vmatmul.mubr.bf16.gmra.mrb[0].mxu0 %v2057
  %v2102 = vpop.f32.mrb[0].mxu0
  %v2103 = vadd.f32 %v846, %v2102
  %v2104 = vpop.f32.mrb[0].mxu0
  %v2105 = vpop.f32.mrb[0].mxu0
  %v2106 = vadd.f32 %v846, %v2105
  %v2107 = vpop.f32.mrb[0].mxu0
  %2108 = vmatprep.mubr.bf16.mxu0 0
  %2109 = vmatmul.mubr.bf16.gmra.mrb[0].mxu0 %v2060
  %v2110 = vpop.f32.mrb[0].mxu0
  %v2111 = vadd.f32 %v846, %v2110
  %v2112 = vpop.f32.mrb[0].mxu0
  %v2113 = vpop.f32.mrb[0].mxu0
  %v2114 = vadd.f32 %v846, %v2113
  %v2115 = vpop.f32.mrb[0].mxu0
  %2116 = vmatprep.mubr.bf16.mxu0 0
  %2117 = vmatmul.mubr.bf16.gmra.mrb[0].mxu0 %v2063
  %v2118 = vpop.f32.mrb[0].mxu0
  %v2119 = vadd.f32 %v846, %v2118
  %v2120 = vpop.f32.mrb[0].mxu0
  %v2121 = vpop.f32.mrb[0].mxu0
  %v2122 = vadd.f32 %v846, %v2121
  %v2123 = vpop.f32.mrb[0].mxu0
  %2124 = vmatprep.mubr.bf16.mxu0 0
  %2125 = vmatmul.mubr.bf16.gmra.mrb[0].mxu0 %v2066
  %v2126 = vpop.f32.mrb[0].mxu0
  %v2127 = vadd.f32 %v846, %v2126
  %v2128 = vpop.f32.mrb[0].mxu0
  %v2129 = vpop.f32.mrb[0].mxu0
  %v2130 = vadd.f32 %v846, %v2129
  %v2131 = vpop.f32.mrb[0].mxu0
  %2132 = vdwg.mxu0
  %v2133 = vrot.slane %v2103, 1
  %v2134 = vrot.slane %v2106, 1
  %v2135 = vrot.slane %v2111, 1
  %v2136 = vrot.slane %v2114, 1
  %v2137 = vrot.slane %v2119, 1
  %v2138 = vrot.slane %v2122, 1
  %v2139 = vrot.slane %v2127, 1
  %v2140 = vrot.slane %v2130, 1
  %v2141 = vsel %vm633, %v2139, %v2140
  %v2142 = vsel %vm633, %v2138, %v2139
  %v2143 = vsel %vm633, %v2137, %v2138
  %v2144 = vsel %vm633, %v2136, %v2137
  %v2145 = vsel %vm633, %v2135, %v2136
  %v2146 = vsel %vm633, %v2134, %v2135
  %v2147 = vsel %vm633, %v2133, %v2134
  %v2148 = vsel %vm633, %v2140, %v2133
  %v2149 = vmax.f32 %v2103, %v2147
  %v2150 = vmax.f32 %v2106, %v2146
  %v2151 = vmax.f32 %v2111, %v2145
  %v2152 = vmax.f32 %v2114, %v2144
  %v2153 = vmax.f32 %v2119, %v2143
  %v2154 = vmax.f32 %v2122, %v2142
  %v2155 = vmax.f32 %v2127, %v2141
  %v2156 = vmax.f32 %v2130, %v2148
  %2157 = vst.msk [vmem:[#allocation2] sm:$0xff] %vm812, %v2149
  %2158 = vst.msk [vmem:[#allocation2 + $0x8] sm:$0xff] %vm812, %v2150
  %2159 = vst.msk [vmem:[#allocation2 + $0x10] sm:$0xff] %vm812, %v2151
  %2160 = vst.msk [vmem:[#allocation2 + $0x18] sm:$0xff] %vm812, %v2152
  %2161 = vst.msk [vmem:[#allocation2 + $0x20] sm:$0xff] %vm812, %v2153
  %2162 = vst.msk [vmem:[#allocation2 + $0x28] sm:$0xff] %vm812, %v2154
  %2163 = vst.msk [vmem:[#allocation2 + $0x30] sm:$0xff] %vm812, %v2155
  %2164 = vst.msk [vmem:[#allocation2 + $0x38] sm:$0xff] %vm812, %v2156
  %v2165 = vld [vmem:[#allocation2] ss:$2 sm:$0xff]
  %v2166 = vld [vmem:[%s988] ss:$2 sm:$0xff]
  %v2167 = vld [vmem:[%s990] ss:$2 sm:$0xff]
  %v2168 = vld [vmem:[%s992] ss:$2 sm:$0xff]
  %v2169 = vmul.f32 %v1641, 0.9
  %v2170 = vmul.f32 %v1642, 0.9
  %v2171 = vmul.f32 %v1643, 0.9
  %v2172 = vmul.f32 %v1644, 0.9
  %v2173 = vadd.f32 %v2169, %v2165
  %v2174 = vadd.f32 %v2170, %v2166
  %v2175 = vadd.f32 %v2171, %v2167
  %v2176 = vadd.f32 %v2172, %v2168
  %v2177 = vsub.f32 %v2173, %v1653
  %v2178 = vsub.f32 %v2174, %v1654
  %v2179 = vsub.f32 %v2175, %v1655
  %v2180 = vsub.f32 %v2176, %v1656
  %vm2181 = vcmp.gt.f32.partialorder %v2177, 1.0
  %vm2182 = vcmp.gt.f32.partialorder %v2178, 1.0
  %vm2183 = vcmp.gt.f32.partialorder %v2179, 1.0
  %vm2184 = vcmp.gt.f32.partialorder %v2180, 1.0
  %v2185 = vsel %vm2181, 1, 0
  %v2186 = vsel %vm2182, 1, 0
  %v2187 = vsel %vm2183, 1, 0
  %v2188 = vsel %vm2184, 1, 0
  %v2189 = vcvt.s32.f32 %v2185
  %v2190 = vcvt.s32.f32 %v2186
  %v2191 = vcvt.s32.f32 %v2187
  %v2192 = vcvt.s32.f32 %v2188
  %2193 = vst.msk [vmem:[#allocation3] sm:$0xff] %vm812, %v2189
  %2194 = vst.msk [vmem:[#allocation3 + $0x8] sm:$0xff] %vm812, %v2190
  %2195 = vst.msk [vmem:[#allocation3 + $0x10] sm:$0xff] %vm812, %v2191
  %2196 = vst.msk [vmem:[#allocation3 + $0x18] sm:$0xff] %vm812, %v2192
  %v2197 = vld [vmem:[#allocation3] ss:$8 sm:$0xf]
  %v2198 = vld [vmem:[%s1019] ss:$8 sm:$0xf]
  %v2199 = vld [vmem:[%s1021] ss:$8 sm:$0xf]
  %v2200 = vld [vmem:[%s1023] ss:$8 sm:$0xf]
  %v2201 = vld [vmem:[%s1025] ss:$8 sm:$0xf]
  %v2202 = vld [vmem:[%s1027] ss:$8 sm:$0xf]
  %v2203 = vld [vmem:[%s1029] ss:$8 sm:$0xf]
  %v2204 = vld [vmem:[%s1031] ss:$8 sm:$0xf]
  %2206 = vrot.lane.b32.xlu0 %v2198, 32
  %v2207 = vpop.permute.xlu0 %2206
  %2210 = vrot.lane.b32.xlu0 %v2199, 64
  %v2211 = vpop.permute.xlu0 %2210
  %2214 = vrot.lane.b32.xlu0 %v2200, 96
  %v2215 = vpop.permute.xlu0 %2214
  %2218 = vrot.lane.b32.xlu0 %v2202, 32
  %v2219 = vpop.permute.xlu0 %2218
  %2222 = vrot.lane.b32.xlu0 %v2203, 64
  %v2223 = vpop.permute.xlu0 %2222
  %2226 = vrot.lane.b32.xlu0 %v2204, 96
  %v2227 = vpop.permute.xlu0 %2226
  %v2229 = vsel %vm812, %v2197, %v2207
  %v2230 = vsel %vm830, %v2229, %v2211
  %v2231 = vsel %vm1059, %v2230, %v2215
  %v2232 = vsel %vm812, %v2201, %v2219
  %v2233 = vsel %vm830, %v2232, %v2223
  %v2234 = vsel %vm1059, %v2233, %v2227
  %v2235 = vpack.c.bf16 %v2231, %v2231
  %v2236 = vpack.c.bf16 %v2234, %v2234
  %2237 = vmatprep.subr.bf16.mxu0 0
  %2238 = vmatpush1.bf16.msra.mxu0 %v1134
  %2239 = vmatprep.subr.bf16.mxu0 0
  %2240 = vmatpush1.bf16.msra.mxu0 %v1135
  %2241 = vmatprep.subr.bf16.mxu0 0
  %2242 = vmatpush1.bf16.msra.mxu0 %v1136
  %2243 = vmatprep.subr.bf16.mxu0 0
  %2244 = vmatpush1.bf16.msra.mxu0 %v1137
  %2245 = vmatprep.subr.bf16.mxu0 0
  %2246 = vmatpush1.bf16.msra.mxu0 %v1138
  %2247 = vmatprep.subr.bf16.mxu0 0
  %2248 = vmatpush1.bf16.msra.mxu0 %v1139
  %2249 = vmatprep.subr.bf16.mxu0 0
  %2250 = vmatpush1.bf16.msra.mxu0 %v1140
  %2251 = vmatprep.subr.bf16.mxu0 0
  %2252 = vmatpush1.bf16.msra.mxu0 %v1141
  %2253 = vmatprep.subr.bf16.mxu0 0
  %2254 = vmatpush1.bf16.msra.mxu0 %v1142
  %2255 = vmatprep.subr.bf16.mxu0 0
  %2256 = vmatpush1.bf16.msra.mxu0 %v1143
  %2257 = vmatprep.subr.bf16.mxu0 0
  %2258 = vmatpush1.bf16.msra.mxu0 %v1144
  %2259 = vmatprep.subr.bf16.mxu0 0
  %2260 = vmatpush1.bf16.msra.mxu0 %v1145
  %2261 = vmatprep.subr.bf16.mxu0 0
  %2262 = vmatpush1.bf16.msra.mxu0 %v1146
  %2263 = vmatprep.subr.bf16.mxu0 0
  %2264 = vmatpush1.bf16.msra.mxu0 %v1147
  %2265 = vmatprep.subr.bf16.mxu0 0
  %2266 = vmatpush1.bf16.msra.mxu0 %v1148
  %2267 = vmatprep.subr.bf16.mxu0 0
  %2268 = vmatpush1.bf16.msra.mxu0 %v1149
  %2269 = vmatprep.mubr.bf16.mxu0 %v2236
  %2270 = vmatmul.mubr.bf16.gmra.mrb[0].mxu0 %v2235
  %v2271 = vpop.f32.mrb[0].mxu0
  %v2272 = vadd.f32 %v1069, %v2271
  %v2273 = vpop.f32.mrb[0].mxu0
  %v2274 = vpop.f32.mrb[0].mxu0
  %v2275 = vpop.f32.mrb[0].mxu0
  %2276 = vdwg.mxu0
  %v2277 = vmul.f32 %v1743, 0.9
  %v2278 = vadd.f32 %v2277, %v2272
  %v2279 = vsub.f32 %v2278, %v1746
  %vm2280 = vcmp.gt.f32.partialorder %v2279, 1.0
  %v2281 = vsel %vm2280, 1, 0
  %v2282 = vcvt.s32.f32 %v2281
  %v2283 = vadd.f32 %v1747, %v2282
  %v2284 = vlaneseq
  %v2285 = vshrl.u32 %v2284, 7
  %v2286 = vsub.s32 0, %v2285
  %v2287 = vrot.slane %v61, %v2286
  %v2288 = vmul.f32 %v2283, %v2287
  %vm2289 = vcmask 257024
  %v2290 = vsel %vm2289, %v2288, 0.0
  %2291 = vadd.xlane.f32.xlu0 %v2290
  %v2292 = vpop.xlane.xlu0 %2291
  %v2293 = vmul.f32 %v62, 3.0
  %v2294 = vlaneseq
  %v2295 = vshrl.u32 %v2294, 7
  %v2296 = vsub.s32 0, %v2295
  %v2297 = vrot.slane %v2293, %v2296
  %v2298 = vadd.f32 %v2292, %v2297
  %vm2299 = vcmask 3072
  %2300 = vst.msk [vmem:[%s3] sm:$0xf] %vm2299, %v2298
  // Predicated region
  $region14: #{tpu_custom_call.1} parent=0 // pred_check
    _
  $region15: #{tpu_custom_call.1} parent=0 // pred_check_branch
    %2302 = sbr.rel (0) target = $region17
  $region16: #{tpu_custom_call.1} parent=0 // pred_region
    _
  $region17: #{tpu_custom_call.1} parent=0 // pred_fallthru
    _
  // Predicated region
  $region18: #{tpu_custom_call.1} parent=0 // pred_check
    _
  $region19: #{tpu_custom_call.1} parent=0 // pred_check_branch
    %2304 = sbr.rel (0) target = $region21
  $region20: #{tpu_custom_call.1} parent=0 // pred_region
    _
  $region21: #{tpu_custom_call.1} parent=0 // pred_fallthru
    _

</llo_original>
